<compile_context>
chip_gen: v7x
topology: tpu7x:2x2x1
jax: 0.10.0
libtpu: 0.0.40
codegen_flags: <defaults>
</compile_context>

<pallas_src>
import functools

import jax
import jax.numpy as jnp
from jax.experimental import pallas as pl
from jax.experimental.pallas import tpu as pltpu


# ----------------------------------------------------------------------------
# Fused Pallas kernel: BB batch elements per grid step.
# ----------------------------------------------------------------------------
def _law_fused_kernel(lens_ref,                       # SMEM scalar prefetch (Bp,) int32
                      enc_ref, dec_ref,               # (BB,T,E) bf16, (1,BB,D) f32
                      wenc_ref, wdec_ref, bfeat_ref,  # (E,A) bf16, (D,A) f32, (1,A) f32
                      weff_ref, wattn_ref,            # (KW,A) f32, (1,A) f32
                      wout_ref, bout_ref,             # (E,O) bf16, (1,O) f32
                      ctx_ref, attn_ref,              # (1,BB,O) f32, (1,BB,T) f32
                      *, scaling):
    nb = pl.program_id(0)
    BB, T, E = enc_ref.shape
    A = wenc_ref.shape[1]
    KW = weff_ref.shape[0]
    half_k = (KW - 1) // 2

    # ---- batched mlp_enc: (BB*T, E) @ (E, A), bf16 inputs, f32 accumulate ---
    enc_bf = enc_ref[...]                                            # (BB, T, E) bf16
    enc_h = jnp.dot(enc_bf.reshape(BB * T, E), wenc_ref[...],
                    preferred_element_type=jnp.float32)              # (BB*T, A) f32

    # ---- batched mlp_dec (+ folded biases b_enc + b_dec + b_loc) ------------
    dec_h = jnp.dot(dec_ref[0], wdec_ref[...],
                    preferred_element_type=jnp.float32) + bfeat_ref[...]  # (BB, A) f32

    pos = jax.lax.broadcasted_iota(jnp.int32, (1, T), 1)             # (1, T)

    attn_rows = []
    ctx_rows = []
    for b in range(BB):                                              # static unroll, BB small
        len_i = lens_ref[nb * BB + b]                                # scalar int32 (SMEM)
        len_f = len_i.astype(jnp.float32)
        mask_row = pos < len_i                                       # (1, T) bool
        # first-step prev_attn = mask * 1/enc_len  (enc_len >= 1 assumed)
        prev_row = mask_row.astype(jnp.float32) * (1.0 / len_f)      # (1, T)

        # conv_loc + mlp_loc folded: build im2col rows S[j, t] = prev[t + j - K],
        # then one MXU matmul with w_eff = w_conv^T @ w_loc^T.
        if half_k > 0:
            zpad = jnp.zeros((1, half_k), jnp.float32)
            padded = jnp.concatenate([zpad, prev_row, zpad], axis=1)  # (1, T + 2K)
        else:
            padded = prev_row
        # TODO(synk): pltpu.roll-based shifts would move tap construction to the XLU.
        s_mat = jnp.concatenate([padded[:, j:j + T] for j in range(KW)], axis=0)  # (KW, T)
        loc_h = jax.lax.dot_general(
            s_mat, weff_ref[...],
            dimension_numbers=(((0,), (0,)), ((), ())),
            preferred_element_type=jnp.float32)                       # (T, A)

        # attention energies: mlp_attn(tanh(enc_h + dec_h + loc_h))
        feat = jnp.tanh(enc_h[b * T:(b + 1) * T, :] + dec_h[b:b + 1, :] + loc_h)  # (T, A)
        score = jax.lax.dot_general(
            wattn_ref[...], feat,
            dimension_numbers=(((1,), (1,)), ((), ())),
            preferred_element_type=jnp.float32)                       # (1, T)

        # masked_fill(-inf), * scaling (scaling > 0), softmax over T (lane axis)
        score = jnp.where(mask_row, score * scaling, -jnp.inf)
        m = jnp.max(score, axis=-1, keepdims=True)
        e = jnp.exp(score - m)                                        # masked lanes -> 0
        attn_row = e / jnp.sum(e, axis=-1, keepdims=True)             # exact normalization
        attn_rows.append(attn_row)

        # context_b = attn_b @ enc_b  (bf16 operands, f32 accumulate)
        ctx_rows.append(jnp.dot(attn_row.astype(jnp.bfloat16), enc_bf[b],
                                preferred_element_type=jnp.float32))  # (1, E)

    attn_all = jnp.concatenate(attn_rows, axis=0)                     # (BB, T)
    ctx_all = jnp.concatenate(ctx_rows, axis=0)                       # (BB, E)

    # batched mlp_out: one (BB, E) @ (E, O) matmul
    out = jnp.dot(ctx_all.astype(jnp.bfloat16), wout_ref[...],
                  preferred_element_type=jnp.float32) + bout_ref[...]  # (BB, O)

    ctx_ref[0] = out
    attn_ref[0] = attn_all


# ----------------------------------------------------------------------------
# One-time weight layout prep (hoisted out of the per-call hot path)
# ----------------------------------------------------------------------------
def prepare_inference_params(params):
    w_conv = params["w_conv"][:, 0, :]                      # (C, 2K+1), in_channels == 1
    w_loc_t = jnp.transpose(params["w_loc"])                # (C, A)
    w_eff = jnp.dot(jnp.transpose(w_conv), w_loc_t)         # (2K+1, A)  folded conv∘mlp_loc
    b_feat = (params["b_enc"] + params["b_dec"] + params["b_loc"]).reshape(1, -1)
    return {
        "scaling": float(params["scaling"]),
        "w_enc_t": jnp.transpose(params["w_enc"]).astype(jnp.bfloat16),   # (E, A)
        "w_dec_t": jnp.transpose(params["w_dec"]).astype(jnp.float32),    # (D, A)
        "b_feat": b_feat.astype(jnp.float32),                             # (1, A)
        "w_eff": w_eff.astype(jnp.float32),                               # (2K+1, A)
        "w_attn": params["w_attn"].astype(jnp.float32),                   # (1, A)
        "w_out_t": jnp.transpose(params["w_out"]).astype(jnp.bfloat16),   # (E, O)
        "b_out": params["b_out"].reshape(1, -1).astype(jnp.float32),      # (1, O)
    }


# ----------------------------------------------------------------------------
# Wrapper
# ----------------------------------------------------------------------------
def location_aware_attention_forward(prep, enc_states, enc_len, dec_states, *, block_b=8):
    """enc_states (B,T,E), enc_len (B,), dec_states (B,D) -> (context (B,O), attn (B,T))."""
    B, T, E = enc_states.shape
    D = dec_states.shape[1]
    A = prep["w_enc_t"].shape[1]
    KW = prep["w_eff"].shape[0]
    O = prep["w_out_t"].shape[1]

    BB = max(1, min(block_b, B))
    NB = pl.cdiv(B, BB)
    Bp = NB * BB

    enc_p = enc_states
    dec_p = dec_states
    len_p = enc_len.astype(jnp.int32)
    if Bp != B:
        enc_p = jnp.pad(enc_p, ((0, Bp - B), (0, 0), (0, 0)))
        dec_p = jnp.pad(dec_p, ((0, Bp - B), (0, 0)))
        len_p = jnp.pad(len_p, ((0, Bp - B),), constant_values=1)   # avoid 0-length rows

    enc_bf = enc_p.astype(jnp.bfloat16)                    # bf16 HBM traffic for the big read
    dec_3 = dec_p.reshape(NB, BB, D).astype(jnp.float32)

    kernel = functools.partial(_law_fused_kernel, scaling=prep["scaling"])

    grid_spec = pltpu.PrefetchScalarGridSpec(
        num_scalar_prefetch=1,                              # enc_len lives in SMEM
        grid=(NB,),
        in_specs=[
            pl.BlockSpec((BB, T, E), lambda nb, lens: (nb, 0, 0)),   # enc_states (bf16)
            pl.BlockSpec((1, BB, D), lambda nb, lens: (nb, 0, 0)),   # dec_states
            pl.BlockSpec((E, A), lambda nb, lens: (0, 0)),           # mlp_enc.weight^T (bf16)
            pl.BlockSpec((D, A), lambda nb, lens: (0, 0)),           # mlp_dec.weight^T
            pl.BlockSpec((1, A), lambda nb, lens: (0, 0)),           # folded bias (enc+dec+loc)
            pl.BlockSpec((KW, A), lambda nb, lens: (0, 0)),          # folded conv∘mlp_loc weight
            pl.BlockSpec((1, A), lambda nb, lens: (0, 0)),           # mlp_attn.weight
            pl.BlockSpec((E, O), lambda nb, lens: (0, 0)),           # mlp_out.weight^T (bf16)
            pl.BlockSpec((1, O), lambda nb, lens: (0, 0)),           # mlp_out.bias
        ],
        out_specs=(
            pl.BlockSpec((1, BB, O), lambda nb, lens: (nb, 0, 0)),
            pl.BlockSpec((1, BB, T), lambda nb, lens: (nb, 0, 0)),
        ),
    )

    # Explicit scoped-VMEM budget (review: v5e default 16 MiB can be too small).
    est = (2 * (BB * T * E * 2 + BB * D * 4 + BB * O * 4 + BB * T * 4)
           + (E * A * 2 + D * A * 4 + KW * A * 4 + 2 * A * 4 + E * O * 2 + O * 4)
           + 4 * BB * T * A * 4 + 2 * BB * T * E * 4)
    vmem_limit = int(min(64 * 2 ** 20, max(32 * 2 ** 20, 2 * est)))

    ctx3, attn3 = pl.pallas_call(
        kernel,
        out_shape=(jax.ShapeDtypeStruct((NB, BB, O), jnp.float32),
                   jax.ShapeDtypeStruct((NB, BB, T), jnp.float32)),
        grid_spec=grid_spec,
        compiler_params=pltpu.CompilerParams(
            dimension_semantics=("parallel",),
            vmem_limit_bytes=vmem_limit),
    )(len_p, enc_bf, dec_3,
      prep["w_enc_t"], prep["w_dec_t"], prep["b_feat"], prep["w_eff"],
      prep["w_attn"], prep["w_out_t"], prep["b_out"])

    return ctx3.reshape(Bp, O)[:B], attn3.reshape(Bp, T)[:B]


# ----------------------------------------------------------------------------
# Pure-JAX f32 reference (independent path, for correctness check)
# ----------------------------------------------------------------------------
def location_aware_attention_reference(params, enc_states, enc_len, dec_states):
    B, T, E = enc_states.shape
    kw = params["w_conv"].shape[2]
    half_k = (kw - 1) // 2

    enc_h = enc_states @ params["w_enc"].T + params["b_enc"]             # (B, T, A)
    t_idx = jnp.arange(T, dtype=jnp.float32)[None, :]
    enc_len_f = enc_len.astype(jnp.float32)
    mask = (t_idx < enc_len_f[:, None]).astype(jnp.float32)              # (B, T)
    prev_attn = mask * (1.0 / enc_len_f)[:, None]                        # (B, T)

    attn_conv = jax.lax.conv_general_dilated(
        prev_attn[:, None, :], params["w_conv"], window_strides=(1,),
        padding=[(half_k, half_k)], dimension_numbers=("NCH", "OIH", "NCH"))  # (B, C, T)
    attn_conv = jnp.einsum("bct,ac->bta", attn_conv, params["w_loc"]) + params["b_loc"]

    dec_h = dec_states @ params["w_dec"].T + params["b_dec"]             # (B, A)
    feat = jnp.tanh(enc_h + dec_h[:, None, :] + attn_conv)               # (B, T, A)
    scores = jnp.squeeze(feat @ params["w_attn"].T, -1)                  # (B, T)
    scores = jnp.where(mask == 0, -jnp.inf, scores)
    attn = jax.nn.softmax(scores * params["scaling"], axis=-1)
    context = jnp.einsum("bt,bte->be", attn, enc_states)
    context = context @ params["w_out"].T + params["b_out"]
    return context, attn


# ----------------------------------------------------------------------------
# Deterministic parameter construction (PyTorch layouts)
# ----------------------------------------------------------------------------
def make_params(key, enc_dim, dec_dim, attn_dim, output_dim,
                conv_channels, kernel_size, scaling=1.0):
    ks = jax.random.split(key, 10)

    def xavier(k, out_f, in_f):
        bound = (6.0 / (in_f + out_f)) ** 0.5
        return jax.random.uniform(k, (out_f, in_f), jnp.float32, -bound, bound)

    kw = 2 * kernel_size + 1
    return {
        "scaling": float(scaling),
        "w_enc": xavier(ks[0], attn_dim, enc_dim),
        "b_enc": 0.05 * jax.random.normal(ks[1], (attn_dim,), jnp.float32),
        "w_dec": xavier(ks[2], attn_dim, dec_dim),
        "b_dec": 0.05 * jax.random.normal(ks[3], (attn_dim,), jnp.float32),
        "w_conv": 0.2 * jax.random.normal(ks[4], (conv_channels, 1, kw), jnp.float32),
        "w_loc": xavier(ks[5], attn_dim, conv_channels),
        "b_loc": 0.05 * jax.random.normal(ks[6], (attn_dim,), jnp.float32),
        "w_attn": xavier(ks[7], 1, attn_dim),                 # no bias
        "w_out": xavier(ks[8], output_dim, enc_dim),
        "b_out": 0.05 * jax.random.normal(ks[9], (output_dim,), jnp.float32),
    }


if __name__ == "__main__":
    # Small config (B=5 with block_b=4 exercises batch blocking, a 2-step grid and
    # batch padding).  Benchmarks should use production T/E/A, not this config.
    B, T = 5, 16
    enc_dim, dec_dim, attn_dim, output_dim = 32, 24, 32, 16
    conv_channels, kernel_size = 8, 3

    key = jax.random.PRNGKey(0)
    pkey, ekey, dkey = jax.random.split(key, 3)
    params = make_params(pkey, enc_dim, dec_dim, attn_dim, output_dim,
                         conv_channels, kernel_size, scaling=1.0)

    enc_states = jax.random.normal(ekey, (B, T, enc_dim), jnp.float32)
    dec_states = jax.random.normal(dkey, (B, dec_dim), jnp.float32)
    enc_len = jnp.array([16.0, 12.0, 9.0, 5.0, 16.0], jnp.float32)   # ragged lengths

    prep = prepare_inference_params(params)   # one-time weight layout prep

    context, attn = location_aware_attention_forward(
        prep, enc_states, enc_len, dec_states, block_b=4)
    context = jax.block_until_ready(context)
    attn = jax.block_until_ready(attn)

    ref_ctx, ref_attn = location_aware_attention_reference(params, enc_states, enc_len, dec_states)
    assert context.shape == (B, output_dim)
    assert attn.shape == (B, T)
    # bf16 enc/weights in the kernel vs full-f32 reference -> loose-ish tolerance.
    assert jnp.allclose(context, ref_ctx, atol=3e-2, rtol=3e-2), \
        float(jnp.max(jnp.abs(context - ref_ctx)))
    assert jnp.allclose(attn, ref_attn, atol=3e-2, rtol=3e-2), \
        float(jnp.max(jnp.abs(attn - ref_attn)))

    print("KERNEL_OK")
</pallas_src>

<mosaic_0001>
module attributes {stable_mosaic.version = 11 : i64} {
  func.func @_law_fused_kernel(%arg0: i32, %arg1: memref<8xi32, #tpu.memory_space<smem>>, %arg2: memref<4x16x32xbf16, #tpu.memory_space<vmem>>, %arg3: memref<1x4x24xf32, #tpu.memory_space<vmem>>, %arg4: memref<32x32xbf16, #tpu.memory_space<vmem>>, %arg5: memref<24x32xf32, #tpu.memory_space<vmem>>, %arg6: memref<1x32xf32, #tpu.memory_space<vmem>>, %arg7: memref<7x32xf32, #tpu.memory_space<vmem>>, %arg8: memref<1x32xf32, #tpu.memory_space<vmem>>, %arg9: memref<32x16xbf16, #tpu.memory_space<vmem>>, %arg10: memref<1x16xf32, #tpu.memory_space<vmem>>, %arg11: memref<1x4x16xf32, #tpu.memory_space<vmem>>, %arg12: memref<1x4x16xf32, #tpu.memory_space<vmem>>) attributes {dimension_semantics = [#tpu.dimension_semantics<parallel>], iteration_bounds = array<i64: 2>, scalar_prefetch = 1 : i64, scratch_operands = 0 : i64, tpu.core_type = #tpu.core_type<tc>, window_params = [{transform_indices = @transform_0, window_bounds = array<i64: 4, 16, 32>}, {transform_indices = @transform_1, window_bounds = array<i64: 1, 4, 24>}, {pipeline_mode = #tpu.pipeline_mode<synchronous>, transform_indices = @transform_2, window_bounds = array<i64: 32, 32>}, {pipeline_mode = #tpu.pipeline_mode<synchronous>, transform_indices = @transform_3, window_bounds = array<i64: 24, 32>}, {pipeline_mode = #tpu.pipeline_mode<synchronous>, transform_indices = @transform_4, window_bounds = array<i64: 1, 32>}, {pipeline_mode = #tpu.pipeline_mode<synchronous>, transform_indices = @transform_5, window_bounds = array<i64: 7, 32>}, {pipeline_mode = #tpu.pipeline_mode<synchronous>, transform_indices = @transform_6, window_bounds = array<i64: 1, 32>}, {pipeline_mode = #tpu.pipeline_mode<synchronous>, transform_indices = @transform_7, window_bounds = array<i64: 32, 16>}, {pipeline_mode = #tpu.pipeline_mode<synchronous>, transform_indices = @transform_8, window_bounds = array<i64: 1, 16>}, {transform_indices = @transform_9, window_bounds = array<i64: 1, 4, 16>}, {transform_indices = @transform_10, window_bounds = array<i64: 1, 4, 16>}]} {
    %c0 = arith.constant 0 : index
    %c0_0 = arith.constant 0 : index
    %c0_1 = arith.constant 0 : index
    %0 = vector.load %arg2[%c0, %c0_0, %c0_1] : memref<4x16x32xbf16, #tpu.memory_space<vmem>>, vector<4x16x32xbf16>
    %1 = vector.shape_cast %0 : vector<4x16x32xbf16> to vector<64x32xbf16>
    %c0_2 = arith.constant 0 : index
    %c0_3 = arith.constant 0 : index
    %2 = vector.load %arg4[%c0_2, %c0_3] : memref<32x32xbf16, #tpu.memory_space<vmem>>, vector<32x32xbf16>
    %cst = arith.constant dense<0.000000e+00> : vector<64x32xf32>
    %3 = tpu.matmul %1, %2, %cst {dimension_numbers = #tpu.dot_dimension_numbers<[1], [0], [0], [1], [0, 0, 1, 1], [], []>} : vector<64x32xbf16>, vector<32x32xbf16>, vector<64x32xf32> -> vector<64x32xf32>
    %c0_4 = arith.constant 0 : index
    %c0_5 = arith.constant 0 : index
    %c0_6 = arith.constant 0 : index
    %4 = vector.load %arg3[%c0_4, %c0_5, %c0_6] : memref<1x4x24xf32, #tpu.memory_space<vmem>>, vector<1x4x24xf32>
    %5 = vector.shape_cast %4 : vector<1x4x24xf32> to vector<4x24xf32>
    %c0_7 = arith.constant 0 : index
    %c0_8 = arith.constant 0 : index
    %6 = vector.load %arg5[%c0_7, %c0_8] : memref<24x32xf32, #tpu.memory_space<vmem>>, vector<24x32xf32>
    %cst_9 = arith.constant dense<0.000000e+00> : vector<4x32xf32>
    %7 = tpu.matmul %5, %6, %cst_9 {dimension_numbers = #tpu.dot_dimension_numbers<[1], [0], [0], [1], [0, 0, 1, 1], [], []>} : vector<4x24xf32>, vector<24x32xf32>, vector<4x32xf32> -> vector<4x32xf32>
    %c0_10 = arith.constant 0 : index
    %c0_11 = arith.constant 0 : index
    %8 = vector.load %arg6[%c0_10, %c0_11] : memref<1x32xf32, #tpu.memory_space<vmem>>, vector<1x32xf32>
    %9 = vector.broadcast %8 : vector<1x32xf32> to vector<4x32xf32>
    %10 = arith.addf %7, %9 : vector<4x32xf32>
    %11 = tpu.iota {dimensions = array<i32: 1>} : vector<1x16xi32>
    %c4_i32 = arith.constant 4 : i32
    %12 = arith.muli %arg0, %c4_i32 : i32
    %c0_i32 = arith.constant 0 : i32
    %13 = arith.addi %12, %c0_i32 : i32
    %14 = arith.index_cast %13 : i32 to index
    %15 = memref.load %arg1[%14] : memref<8xi32, #tpu.memory_space<smem>>
    %16 = arith.sitofp %15 : i32 to f32
    %17 = vector.broadcast %15 : i32 to vector<1x16xi32>
    %18 = arith.cmpi slt, %11, %17 : vector<1x16xi32>
    %19 = arith.extui %18 : vector<1x16xi1> to vector<1x16xi32>
    %20 = arith.sitofp %19 : vector<1x16xi32> to vector<1x16xf32>
    %cst_12 = arith.constant 1.000000e+00 : f32
    %21 = arith.divf %cst_12, %16 : f32
    %22 = vector.broadcast %21 : f32 to vector<1x16xf32>
    %23 = arith.mulf %20, %22 : vector<1x16xf32>
    %cst_13 = arith.constant 0.000000e+00 : f32
    %24 = vector.broadcast %cst_13 : f32 to vector<1x3xf32>
    %25 = tpu.concatenate %24, %23, %24 in 1 : vector<1x3xf32>, vector<1x16xf32>, vector<1x3xf32> -> vector<1x22xf32>
    %26 = vector.extract_strided_slice %25 {offsets = [0, 0], sizes = [1, 16], strides = [1, 1]} : vector<1x22xf32> to vector<1x16xf32>
    %27 = vector.extract_strided_slice %25 {offsets = [0, 1], sizes = [1, 16], strides = [1, 1]} : vector<1x22xf32> to vector<1x16xf32>
    %28 = vector.extract_strided_slice %25 {offsets = [0, 2], sizes = [1, 16], strides = [1, 1]} : vector<1x22xf32> to vector<1x16xf32>
    %29 = vector.extract_strided_slice %25 {offsets = [0, 3], sizes = [1, 16], strides = [1, 1]} : vector<1x22xf32> to vector<1x16xf32>
    %30 = vector.extract_strided_slice %25 {offsets = [0, 4], sizes = [1, 16], strides = [1, 1]} : vector<1x22xf32> to vector<1x16xf32>
    %31 = vector.extract_strided_slice %25 {offsets = [0, 5], sizes = [1, 16], strides = [1, 1]} : vector<1x22xf32> to vector<1x16xf32>
    %32 = vector.extract_strided_slice %25 {offsets = [0, 6], sizes = [1, 16], strides = [1, 1]} : vector<1x22xf32> to vector<1x16xf32>
    %33 = tpu.concatenate %26, %27, %28, %29, %30, %31, %32 in 0 : vector<1x16xf32>, vector<1x16xf32>, vector<1x16xf32>, vector<1x16xf32>, vector<1x16xf32>, vector<1x16xf32>, vector<1x16xf32> -> vector<7x16xf32>
    %c0_14 = arith.constant 0 : index
    %c0_15 = arith.constant 0 : index
    %34 = vector.load %arg7[%c0_14, %c0_15] : memref<7x32xf32, #tpu.memory_space<vmem>>, vector<7x32xf32>
    %cst_16 = arith.constant dense<0.000000e+00> : vector<16x32xf32>
    %35 = tpu.matmul %33, %34, %cst_16 {dimension_numbers = #tpu.dot_dimension_numbers<[0], [0], [1], [1], [0, 1, 1, 1], [], []>} : vector<7x16xf32>, vector<7x32xf32>, vector<16x32xf32> -> vector<16x32xf32>
    %36 = vector.extract_strided_slice %3 {offsets = [0, 0], sizes = [16, 32], strides = [1, 1]} : vector<64x32xf32> to vector<16x32xf32>
    %37 = vector.extract_strided_slice %10 {offsets = [0, 0], sizes = [1, 32], strides = [1, 1]} : vector<4x32xf32> to vector<1x32xf32>
    %38 = vector.broadcast %37 : vector<1x32xf32> to vector<16x32xf32>
    %39 = arith.addf %36, %38 : vector<16x32xf32>
    %40 = arith.addf %39, %35 : vector<16x32xf32>
    %41 = math.tanh %40 : vector<16x32xf32>
    %c0_17 = arith.constant 0 : index
    %c0_18 = arith.constant 0 : index
    %42 = vector.load %arg8[%c0_17, %c0_18] : memref<1x32xf32, #tpu.memory_space<vmem>>, vector<1x32xf32>
    %cst_19 = arith.constant dense<0.000000e+00> : vector<1x16xf32>
    %43 = tpu.matmul %42, %41, %cst_19 {dimension_numbers = #tpu.dot_dimension_numbers<[1], [1], [0], [0], [0, 0, 1, 0], [], []>} : vector<1x32xf32>, vector<16x32xf32>, vector<1x16xf32> -> vector<1x16xf32>
    %cst_20 = arith.constant 1.000000e+00 : f32
    %44 = vector.broadcast %cst_20 : f32 to vector<1x16xf32>
    %45 = arith.mulf %43, %44 : vector<1x16xf32>
    %cst_21 = arith.constant 0xFF800000 : f32
    %46 = vector.broadcast %cst_21 : f32 to vector<1x16xf32>
    %47 = arith.select %18, %45, %46 : vector<1x16xi1>, vector<1x16xf32>
    %cst_22 = arith.constant dense<0xFF800000> : vector<1xf32>
    %48 = vector.multi_reduction <maximumf>, %47, %cst_22 [1] : vector<1x16xf32> to vector<1xf32>
    %49 = vector.shape_cast %48 : vector<1xf32> to vector<1x1xf32>
    %50 = vector.broadcast %49 : vector<1x1xf32> to vector<1x16xf32>
    %51 = arith.subf %47, %50 : vector<1x16xf32>
    %52 = math.exp %51 : vector<1x16xf32>
    %cst_23 = arith.constant dense<0.000000e+00> : vector<1xf32>
    %53 = vector.multi_reduction <add>, %52, %cst_23 [1] : vector<1x16xf32> to vector<1xf32>
    %54 = vector.shape_cast %53 : vector<1xf32> to vector<1x1xf32>
    %55 = vector.broadcast %54 : vector<1x1xf32> to vector<1x16xf32>
    %56 = arith.divf %52, %55 : vector<1x16xf32>
    %57 = arith.truncf %56 : vector<1x16xf32> to vector<1x16xbf16>
    %58 = vector.extract_strided_slice %0 {offsets = [0, 0, 0], sizes = [1, 16, 32], strides = [1, 1, 1]} : vector<4x16x32xbf16> to vector<1x16x32xbf16>
    %59 = vector.shape_cast %58 : vector<1x16x32xbf16> to vector<16x32xbf16>
    %cst_24 = arith.constant dense<0.000000e+00> : vector<1x32xf32>
    %60 = tpu.matmul %57, %59, %cst_24 {dimension_numbers = #tpu.dot_dimension_numbers<[1], [0], [0], [1], [0, 0, 1, 1], [], []>} : vector<1x16xbf16>, vector<16x32xbf16>, vector<1x32xf32> -> vector<1x32xf32>
    %c4_i32_25 = arith.constant 4 : i32
    %61 = arith.muli %arg0, %c4_i32_25 : i32
    %c1_i32 = arith.constant 1 : i32
    %62 = arith.addi %61, %c1_i32 : i32
    %63 = arith.index_cast %62 : i32 to index
    %64 = memref.load %arg1[%63] : memref<8xi32, #tpu.memory_space<smem>>
    %65 = arith.sitofp %64 : i32 to f32
    %66 = vector.broadcast %64 : i32 to vector<1x16xi32>
    %67 = arith.cmpi slt, %11, %66 : vector<1x16xi32>
    %68 = arith.extui %67 : vector<1x16xi1> to vector<1x16xi32>
    %69 = arith.sitofp %68 : vector<1x16xi32> to vector<1x16xf32>
    %cst_26 = arith.constant 1.000000e+00 : f32
    %70 = arith.divf %cst_26, %65 : f32
    %71 = vector.broadcast %70 : f32 to vector<1x16xf32>
    %72 = arith.mulf %69, %71 : vector<1x16xf32>
    %cst_27 = arith.constant 0.000000e+00 : f32
    %73 = vector.broadcast %cst_27 : f32 to vector<1x3xf32>
    %74 = tpu.concatenate %73, %72, %73 in 1 : vector<1x3xf32>, vector<1x16xf32>, vector<1x3xf32> -> vector<1x22xf32>
    %75 = vector.extract_strided_slice %74 {offsets = [0, 0], sizes = [1, 16], strides = [1, 1]} : vector<1x22xf32> to vector<1x16xf32>
    %76 = vector.extract_strided_slice %74 {offsets = [0, 1], sizes = [1, 16], strides = [1, 1]} : vector<1x22xf32> to vector<1x16xf32>
    %77 = vector.extract_strided_slice %74 {offsets = [0, 2], sizes = [1, 16], strides = [1, 1]} : vector<1x22xf32> to vector<1x16xf32>
    %78 = vector.extract_strided_slice %74 {offsets = [0, 3], sizes = [1, 16], strides = [1, 1]} : vector<1x22xf32> to vector<1x16xf32>
    %79 = vector.extract_strided_slice %74 {offsets = [0, 4], sizes = [1, 16], strides = [1, 1]} : vector<1x22xf32> to vector<1x16xf32>
    %80 = vector.extract_strided_slice %74 {offsets = [0, 5], sizes = [1, 16], strides = [1, 1]} : vector<1x22xf32> to vector<1x16xf32>
    %81 = vector.extract_strided_slice %74 {offsets = [0, 6], sizes = [1, 16], strides = [1, 1]} : vector<1x22xf32> to vector<1x16xf32>
    %82 = tpu.concatenate %75, %76, %77, %78, %79, %80, %81 in 0 : vector<1x16xf32>, vector<1x16xf32>, vector<1x16xf32>, vector<1x16xf32>, vector<1x16xf32>, vector<1x16xf32>, vector<1x16xf32> -> vector<7x16xf32>
    %c0_28 = arith.constant 0 : index
    %c0_29 = arith.constant 0 : index
    %83 = vector.load %arg7[%c0_28, %c0_29] : memref<7x32xf32, #tpu.memory_space<vmem>>, vector<7x32xf32>
    %cst_30 = arith.constant dense<0.000000e+00> : vector<16x32xf32>
    %84 = tpu.matmul %82, %83, %cst_30 {dimension_numbers = #tpu.dot_dimension_numbers<[0], [0], [1], [1], [0, 1, 1, 1], [], []>} : vector<7x16xf32>, vector<7x32xf32>, vector<16x32xf32> -> vector<16x32xf32>
    %85 = vector.extract_strided_slice %3 {offsets = [16, 0], sizes = [16, 32], strides = [1, 1]} : vector<64x32xf32> to vector<16x32xf32>
    %86 = vector.extract_strided_slice %10 {offsets = [1, 0], sizes = [1, 32], strides = [1, 1]} : vector<4x32xf32> to vector<1x32xf32>
    %87 = vector.broadcast %86 : vector<1x32xf32> to vector<16x32xf32>
    %88 = arith.addf %85, %87 : vector<16x32xf32>
    %89 = arith.addf %88, %84 : vector<16x32xf32>
    %90 = math.tanh %89 : vector<16x32xf32>
    %c0_31 = arith.constant 0 : index
    %c0_32 = arith.constant 0 : index
    %91 = vector.load %arg8[%c0_31, %c0_32] : memref<1x32xf32, #tpu.memory_space<vmem>>, vector<1x32xf32>
    %cst_33 = arith.constant dense<0.000000e+00> : vector<1x16xf32>
    %92 = tpu.matmul %91, %90, %cst_33 {dimension_numbers = #tpu.dot_dimension_numbers<[1], [1], [0], [0], [0, 0, 1, 0], [], []>} : vector<1x32xf32>, vector<16x32xf32>, vector<1x16xf32> -> vector<1x16xf32>
    %cst_34 = arith.constant 1.000000e+00 : f32
    %93 = vector.broadcast %cst_34 : f32 to vector<1x16xf32>
    %94 = arith.mulf %92, %93 : vector<1x16xf32>
    %cst_35 = arith.constant 0xFF800000 : f32
    %95 = vector.broadcast %cst_35 : f32 to vector<1x16xf32>
    %96 = arith.select %67, %94, %95 : vector<1x16xi1>, vector<1x16xf32>
    %cst_36 = arith.constant dense<0xFF800000> : vector<1xf32>
    %97 = vector.multi_reduction <maximumf>, %96, %cst_36 [1] : vector<1x16xf32> to vector<1xf32>
    %98 = vector.shape_cast %97 : vector<1xf32> to vector<1x1xf32>
    %99 = vector.broadcast %98 : vector<1x1xf32> to vector<1x16xf32>
    %100 = arith.subf %96, %99 : vector<1x16xf32>
    %101 = math.exp %100 : vector<1x16xf32>
    %cst_37 = arith.constant dense<0.000000e+00> : vector<1xf32>
    %102 = vector.multi_reduction <add>, %101, %cst_37 [1] : vector<1x16xf32> to vector<1xf32>
    %103 = vector.shape_cast %102 : vector<1xf32> to vector<1x1xf32>
    %104 = vector.broadcast %103 : vector<1x1xf32> to vector<1x16xf32>
    %105 = arith.divf %101, %104 : vector<1x16xf32>
    %106 = arith.truncf %105 : vector<1x16xf32> to vector<1x16xbf16>
    %107 = vector.extract_strided_slice %0 {offsets = [1, 0, 0], sizes = [1, 16, 32], strides = [1, 1, 1]} : vector<4x16x32xbf16> to vector<1x16x32xbf16>
    %108 = vector.shape_cast %107 : vector<1x16x32xbf16> to vector<16x32xbf16>
    %cst_38 = arith.constant dense<0.000000e+00> : vector<1x32xf32>
    %109 = tpu.matmul %106, %108, %cst_38 {dimension_numbers = #tpu.dot_dimension_numbers<[1], [0], [0], [1], [0, 0, 1, 1], [], []>} : vector<1x16xbf16>, vector<16x32xbf16>, vector<1x32xf32> -> vector<1x32xf32>
    %c4_i32_39 = arith.constant 4 : i32
    %110 = arith.muli %arg0, %c4_i32_39 : i32
    %c2_i32 = arith.constant 2 : i32
    %111 = arith.addi %110, %c2_i32 : i32
    %112 = arith.index_cast %111 : i32 to index
    %113 = memref.load %arg1[%112] : memref<8xi32, #tpu.memory_space<smem>>
    %114 = arith.sitofp %113 : i32 to f32
    %115 = vector.broadcast %113 : i32 to vector<1x16xi32>
    %116 = arith.cmpi slt, %11, %115 : vector<1x16xi32>
    %117 = arith.extui %116 : vector<1x16xi1> to vector<1x16xi32>
    %118 = arith.sitofp %117 : vector<1x16xi32> to vector<1x16xf32>
    %cst_40 = arith.constant 1.000000e+00 : f32
    %119 = arith.divf %cst_40, %114 : f32
    %120 = vector.broadcast %119 : f32 to vector<1x16xf32>
    %121 = arith.mulf %118, %120 : vector<1x16xf32>
    %cst_41 = arith.constant 0.000000e+00 : f32
    %122 = vector.broadcast %cst_41 : f32 to vector<1x3xf32>
    %123 = tpu.concatenate %122, %121, %122 in 1 : vector<1x3xf32>, vector<1x16xf32>, vector<1x3xf32> -> vector<1x22xf32>
    %124 = vector.extract_strided_slice %123 {offsets = [0, 0], sizes = [1, 16], strides = [1, 1]} : vector<1x22xf32> to vector<1x16xf32>
    %125 = vector.extract_strided_slice %123 {offsets = [0, 1], sizes = [1, 16], strides = [1, 1]} : vector<1x22xf32> to vector<1x16xf32>
    %126 = vector.extract_strided_slice %123 {offsets = [0, 2], sizes = [1, 16], strides = [1, 1]} : vector<1x22xf32> to vector<1x16xf32>
    %127 = vector.extract_strided_slice %123 {offsets = [0, 3], sizes = [1, 16], strides = [1, 1]} : vector<1x22xf32> to vector<1x16xf32>
    %128 = vector.extract_strided_slice %123 {offsets = [0, 4], sizes = [1, 16], strides = [1, 1]} : vector<1x22xf32> to vector<1x16xf32>
    %129 = vector.extract_strided_slice %123 {offsets = [0, 5], sizes = [1, 16], strides = [1, 1]} : vector<1x22xf32> to vector<1x16xf32>
    %130 = vector.extract_strided_slice %123 {offsets = [0, 6], sizes = [1, 16], strides = [1, 1]} : vector<1x22xf32> to vector<1x16xf32>
    %131 = tpu.concatenate %124, %125, %126, %127, %128, %129, %130 in 0 : vector<1x16xf32>, vector<1x16xf32>, vector<1x16xf32>, vector<1x16xf32>, vector<1x16xf32>, vector<1x16xf32>, vector<1x16xf32> -> vector<7x16xf32>
    %c0_42 = arith.constant 0 : index
    %c0_43 = arith.constant 0 : index
    %132 = vector.load %arg7[%c0_42, %c0_43] : memref<7x32xf32, #tpu.memory_space<vmem>>, vector<7x32xf32>
    %cst_44 = arith.constant dense<0.000000e+00> : vector<16x32xf32>
    %133 = tpu.matmul %131, %132, %cst_44 {dimension_numbers = #tpu.dot_dimension_numbers<[0], [0], [1], [1], [0, 1, 1, 1], [], []>} : vector<7x16xf32>, vector<7x32xf32>, vector<16x32xf32> -> vector<16x32xf32>
    %134 = vector.extract_strided_slice %3 {offsets = [32, 0], sizes = [16, 32], strides = [1, 1]} : vector<64x32xf32> to vector<16x32xf32>
    %135 = vector.extract_strided_slice %10 {offsets = [2, 0], sizes = [1, 32], strides = [1, 1]} : vector<4x32xf32> to vector<1x32xf32>
    %136 = vector.broadcast %135 : vector<1x32xf32> to vector<16x32xf32>
    %137 = arith.addf %134, %136 : vector<16x32xf32>
    %138 = arith.addf %137, %133 : vector<16x32xf32>
    %139 = math.tanh %138 : vector<16x32xf32>
    %c0_45 = arith.constant 0 : index
    %c0_46 = arith.constant 0 : index
    %140 = vector.load %arg8[%c0_45, %c0_46] : memref<1x32xf32, #tpu.memory_space<vmem>>, vector<1x32xf32>
    %cst_47 = arith.constant dense<0.000000e+00> : vector<1x16xf32>
    %141 = tpu.matmul %140, %139, %cst_47 {dimension_numbers = #tpu.dot_dimension_numbers<[1], [1], [0], [0], [0, 0, 1, 0], [], []>} : vector<1x32xf32>, vector<16x32xf32>, vector<1x16xf32> -> vector<1x16xf32>
    %cst_48 = arith.constant 1.000000e+00 : f32
    %142 = vector.broadcast %cst_48 : f32 to vector<1x16xf32>
    %143 = arith.mulf %141, %142 : vector<1x16xf32>
    %cst_49 = arith.constant 0xFF800000 : f32
    %144 = vector.broadcast %cst_49 : f32 to vector<1x16xf32>
    %145 = arith.select %116, %143, %144 : vector<1x16xi1>, vector<1x16xf32>
    %cst_50 = arith.constant dense<0xFF800000> : vector<1xf32>
    %146 = vector.multi_reduction <maximumf>, %145, %cst_50 [1] : vector<1x16xf32> to vector<1xf32>
    %147 = vector.shape_cast %146 : vector<1xf32> to vector<1x1xf32>
    %148 = vector.broadcast %147 : vector<1x1xf32> to vector<1x16xf32>
    %149 = arith.subf %145, %148 : vector<1x16xf32>
    %150 = math.exp %149 : vector<1x16xf32>
    %cst_51 = arith.constant dense<0.000000e+00> : vector<1xf32>
    %151 = vector.multi_reduction <add>, %150, %cst_51 [1] : vector<1x16xf32> to vector<1xf32>
    %152 = vector.shape_cast %151 : vector<1xf32> to vector<1x1xf32>
    %153 = vector.broadcast %152 : vector<1x1xf32> to vector<1x16xf32>
    %154 = arith.divf %150, %153 : vector<1x16xf32>
    %155 = arith.truncf %154 : vector<1x16xf32> to vector<1x16xbf16>
    %156 = vector.extract_strided_slice %0 {offsets = [2, 0, 0], sizes = [1, 16, 32], strides = [1, 1, 1]} : vector<4x16x32xbf16> to vector<1x16x32xbf16>
    %157 = vector.shape_cast %156 : vector<1x16x32xbf16> to vector<16x32xbf16>
    %cst_52 = arith.constant dense<0.000000e+00> : vector<1x32xf32>
    %158 = tpu.matmul %155, %157, %cst_52 {dimension_numbers = #tpu.dot_dimension_numbers<[1], [0], [0], [1], [0, 0, 1, 1], [], []>} : vector<1x16xbf16>, vector<16x32xbf16>, vector<1x32xf32> -> vector<1x32xf32>
    %c4_i32_53 = arith.constant 4 : i32
    %159 = arith.muli %arg0, %c4_i32_53 : i32
    %c3_i32 = arith.constant 3 : i32
    %160 = arith.addi %159, %c3_i32 : i32
    %161 = arith.index_cast %160 : i32 to index
    %162 = memref.load %arg1[%161] : memref<8xi32, #tpu.memory_space<smem>>
    %163 = arith.sitofp %162 : i32 to f32
    %164 = vector.broadcast %162 : i32 to vector<1x16xi32>
    %165 = arith.cmpi slt, %11, %164 : vector<1x16xi32>
    %166 = arith.extui %165 : vector<1x16xi1> to vector<1x16xi32>
    %167 = arith.sitofp %166 : vector<1x16xi32> to vector<1x16xf32>
    %cst_54 = arith.constant 1.000000e+00 : f32
    %168 = arith.divf %cst_54, %163 : f32
    %169 = vector.broadcast %168 : f32 to vector<1x16xf32>
    %170 = arith.mulf %167, %169 : vector<1x16xf32>
    %cst_55 = arith.constant 0.000000e+00 : f32
    %171 = vector.broadcast %cst_55 : f32 to vector<1x3xf32>
    %172 = tpu.concatenate %171, %170, %171 in 1 : vector<1x3xf32>, vector<1x16xf32>, vector<1x3xf32> -> vector<1x22xf32>
    %173 = vector.extract_strided_slice %172 {offsets = [0, 0], sizes = [1, 16], strides = [1, 1]} : vector<1x22xf32> to vector<1x16xf32>
    %174 = vector.extract_strided_slice %172 {offsets = [0, 1], sizes = [1, 16], strides = [1, 1]} : vector<1x22xf32> to vector<1x16xf32>
    %175 = vector.extract_strided_slice %172 {offsets = [0, 2], sizes = [1, 16], strides = [1, 1]} : vector<1x22xf32> to vector<1x16xf32>
    %176 = vector.extract_strided_slice %172 {offsets = [0, 3], sizes = [1, 16], strides = [1, 1]} : vector<1x22xf32> to vector<1x16xf32>
    %177 = vector.extract_strided_slice %172 {offsets = [0, 4], sizes = [1, 16], strides = [1, 1]} : vector<1x22xf32> to vector<1x16xf32>
    %178 = vector.extract_strided_slice %172 {offsets = [0, 5], sizes = [1, 16], strides = [1, 1]} : vector<1x22xf32> to vector<1x16xf32>
    %179 = vector.extract_strided_slice %172 {offsets = [0, 6], sizes = [1, 16], strides = [1, 1]} : vector<1x22xf32> to vector<1x16xf32>
    %180 = tpu.concatenate %173, %174, %175, %176, %177, %178, %179 in 0 : vector<1x16xf32>, vector<1x16xf32>, vector<1x16xf32>, vector<1x16xf32>, vector<1x16xf32>, vector<1x16xf32>, vector<1x16xf32> -> vector<7x16xf32>
    %c0_56 = arith.constant 0 : index
    %c0_57 = arith.constant 0 : index
    %181 = vector.load %arg7[%c0_56, %c0_57] : memref<7x32xf32, #tpu.memory_space<vmem>>, vector<7x32xf32>
    %cst_58 = arith.constant dense<0.000000e+00> : vector<16x32xf32>
    %182 = tpu.matmul %180, %181, %cst_58 {dimension_numbers = #tpu.dot_dimension_numbers<[0], [0], [1], [1], [0, 1, 1, 1], [], []>} : vector<7x16xf32>, vector<7x32xf32>, vector<16x32xf32> -> vector<16x32xf32>
    %183 = vector.extract_strided_slice %3 {offsets = [48, 0], sizes = [16, 32], strides = [1, 1]} : vector<64x32xf32> to vector<16x32xf32>
    %184 = vector.extract_strided_slice %10 {offsets = [3, 0], sizes = [1, 32], strides = [1, 1]} : vector<4x32xf32> to vector<1x32xf32>
    %185 = vector.broadcast %184 : vector<1x32xf32> to vector<16x32xf32>
    %186 = arith.addf %183, %185 : vector<16x32xf32>
    %187 = arith.addf %186, %182 : vector<16x32xf32>
    %188 = math.tanh %187 : vector<16x32xf32>
    %c0_59 = arith.constant 0 : index
    %c0_60 = arith.constant 0 : index
    %189 = vector.load %arg8[%c0_59, %c0_60] : memref<1x32xf32, #tpu.memory_space<vmem>>, vector<1x32xf32>
    %cst_61 = arith.constant dense<0.000000e+00> : vector<1x16xf32>
    %190 = tpu.matmul %189, %188, %cst_61 {dimension_numbers = #tpu.dot_dimension_numbers<[1], [1], [0], [0], [0, 0, 1, 0], [], []>} : vector<1x32xf32>, vector<16x32xf32>, vector<1x16xf32> -> vector<1x16xf32>
    %cst_62 = arith.constant 1.000000e+00 : f32
    %191 = vector.broadcast %cst_62 : f32 to vector<1x16xf32>
    %192 = arith.mulf %190, %191 : vector<1x16xf32>
    %cst_63 = arith.constant 0xFF800000 : f32
    %193 = vector.broadcast %cst_63 : f32 to vector<1x16xf32>
    %194 = arith.select %165, %192, %193 : vector<1x16xi1>, vector<1x16xf32>
    %cst_64 = arith.constant dense<0xFF800000> : vector<1xf32>
    %195 = vector.multi_reduction <maximumf>, %194, %cst_64 [1] : vector<1x16xf32> to vector<1xf32>
    %196 = vector.shape_cast %195 : vector<1xf32> to vector<1x1xf32>
    %197 = vector.broadcast %196 : vector<1x1xf32> to vector<1x16xf32>
    %198 = arith.subf %194, %197 : vector<1x16xf32>
    %199 = math.exp %198 : vector<1x16xf32>
    %cst_65 = arith.constant dense<0.000000e+00> : vector<1xf32>
    %200 = vector.multi_reduction <add>, %199, %cst_65 [1] : vector<1x16xf32> to vector<1xf32>
    %201 = vector.shape_cast %200 : vector<1xf32> to vector<1x1xf32>
    %202 = vector.broadcast %201 : vector<1x1xf32> to vector<1x16xf32>
    %203 = arith.divf %199, %202 : vector<1x16xf32>
    %204 = arith.truncf %203 : vector<1x16xf32> to vector<1x16xbf16>
    %205 = vector.extract_strided_slice %0 {offsets = [3, 0, 0], sizes = [1, 16, 32], strides = [1, 1, 1]} : vector<4x16x32xbf16> to vector<1x16x32xbf16>
    %206 = vector.shape_cast %205 : vector<1x16x32xbf16> to vector<16x32xbf16>
    %cst_66 = arith.constant dense<0.000000e+00> : vector<1x32xf32>
    %207 = tpu.matmul %204, %206, %cst_66 {dimension_numbers = #tpu.dot_dimension_numbers<[1], [0], [0], [1], [0, 0, 1, 1], [], []>} : vector<1x16xbf16>, vector<16x32xbf16>, vector<1x32xf32> -> vector<1x32xf32>
    %208 = tpu.concatenate %56, %105, %154, %203 in 0 : vector<1x16xf32>, vector<1x16xf32>, vector<1x16xf32>, vector<1x16xf32> -> vector<4x16xf32>
    %209 = tpu.concatenate %60, %109, %158, %207 in 0 : vector<1x32xf32>, vector<1x32xf32>, vector<1x32xf32>, vector<1x32xf32> -> vector<4x32xf32>
    %210 = arith.truncf %209 : vector<4x32xf32> to vector<4x32xbf16>
    %c0_67 = arith.constant 0 : index
    %c0_68 = arith.constant 0 : index
    %211 = vector.load %arg9[%c0_67, %c0_68] : memref<32x16xbf16, #tpu.memory_space<vmem>>, vector<32x16xbf16>
    %cst_69 = arith.constant dense<0.000000e+00> : vector<4x16xf32>
    %212 = tpu.matmul %210, %211, %cst_69 {dimension_numbers = #tpu.dot_dimension_numbers<[1], [0], [0], [1], [0, 0, 1, 1], [], []>} : vector<4x32xbf16>, vector<32x16xbf16>, vector<4x16xf32> -> vector<4x16xf32>
    %c0_70 = arith.constant 0 : index
    %c0_71 = arith.constant 0 : index
    %213 = vector.load %arg10[%c0_70, %c0_71] : memref<1x16xf32, #tpu.memory_space<vmem>>, vector<1x16xf32>
    %214 = vector.broadcast %213 : vector<1x16xf32> to vector<4x16xf32>
    %215 = arith.addf %212, %214 : vector<4x16xf32>
    %c0_72 = arith.constant 0 : index
    %c0_73 = arith.constant 0 : index
    %c0_74 = arith.constant 0 : index
    %216 = vector.load %arg11[%c0_72, %c0_73, %c0_74] : memref<1x4x16xf32, #tpu.memory_space<vmem>>, vector<1x4x16xf32>
    %217 = vector.shape_cast %216 : vector<1x4x16xf32> to vector<4x16xf32>
    %218 = vector.shape_cast %215 : vector<4x16xf32> to vector<1x4x16xf32>
    tpu.vector_store %arg11[%c0_72, %c0_73, %c0_74], %218 {strides = array<i32>} : memref<1x4x16xf32, #tpu.memory_space<vmem>>, vector<1x4x16xf32>,
    %c0_75 = arith.constant 0 : index
    %c0_76 = arith.constant 0 : index
    %c0_77 = arith.constant 0 : index
    %219 = vector.load %arg12[%c0_75, %c0_76, %c0_77] : memref<1x4x16xf32, #tpu.memory_space<vmem>>, vector<1x4x16xf32>
    %220 = vector.shape_cast %219 : vector<1x4x16xf32> to vector<4x16xf32>
    %221 = vector.shape_cast %208 : vector<4x16xf32> to vector<1x4x16xf32>
    tpu.vector_store %arg12[%c0_75, %c0_76, %c0_77], %221 {strides = array<i32>} : memref<1x4x16xf32, #tpu.memory_space<vmem>>, vector<1x4x16xf32>,
    return
  }
  func.func @transform_0(%arg0: i32, %arg1: memref<8xi32, #tpu.memory_space<smem>>) -> (i32, i32, i32) {
    %c0_i32 = arith.constant 0 : i32
    %c0_i32_0 = arith.constant 0 : i32
    %c0_i32_1 = arith.constant 0 : i32
    return %arg0, %c0_i32, %c0_i32_0 : i32, i32, i32
  }
  func.func @transform_1(%arg0: i32, %arg1: memref<8xi32, #tpu.memory_space<smem>>) -> (i32, i32, i32) {
    %c0_i32 = arith.constant 0 : i32
    %c0_i32_0 = arith.constant 0 : i32
    %c0_i32_1 = arith.constant 0 : i32
    return %arg0, %c0_i32, %c0_i32_0 : i32, i32, i32
  }
  func.func @transform_2(%arg0: i32, %arg1: memref<8xi32, #tpu.memory_space<smem>>) -> (i32, i32) {
    %c0_i32 = arith.constant 0 : i32
    %c0_i32_0 = arith.constant 0 : i32
    %c0_i32_1 = arith.constant 0 : i32
    return %c0_i32, %c0_i32_0 : i32, i32
  }
  func.func @transform_3(%arg0: i32, %arg1: memref<8xi32, #tpu.memory_space<smem>>) -> (i32, i32) {
    %c0_i32 = arith.constant 0 : i32
    %c0_i32_0 = arith.constant 0 : i32
    %c0_i32_1 = arith.constant 0 : i32
    return %c0_i32, %c0_i32_0 : i32, i32
  }
  func.func @transform_4(%arg0: i32, %arg1: memref<8xi32, #tpu.memory_space<smem>>) -> (i32, i32) {
    %c0_i32 = arith.constant 0 : i32
    %c0_i32_0 = arith.constant 0 : i32
    %c0_i32_1 = arith.constant 0 : i32
    return %c0_i32, %c0_i32_0 : i32, i32
  }
  func.func @transform_5(%arg0: i32, %arg1: memref<8xi32, #tpu.memory_space<smem>>) -> (i32, i32) {
    %c0_i32 = arith.constant 0 : i32
    %c0_i32_0 = arith.constant 0 : i32
    %c0_i32_1 = arith.constant 0 : i32
    return %c0_i32, %c0_i32_0 : i32, i32
  }
  func.func @transform_6(%arg0: i32, %arg1: memref<8xi32, #tpu.memory_space<smem>>) -> (i32, i32) {
    %c0_i32 = arith.constant 0 : i32
    %c0_i32_0 = arith.constant 0 : i32
    %c0_i32_1 = arith.constant 0 : i32
    return %c0_i32, %c0_i32_0 : i32, i32
  }
  func.func @transform_7(%arg0: i32, %arg1: memref<8xi32, #tpu.memory_space<smem>>) -> (i32, i32) {
    %c0_i32 = arith.constant 0 : i32
    %c0_i32_0 = arith.constant 0 : i32
    %c0_i32_1 = arith.constant 0 : i32
    return %c0_i32, %c0_i32_0 : i32, i32
  }
  func.func @transform_8(%arg0: i32, %arg1: memref<8xi32, #tpu.memory_space<smem>>) -> (i32, i32) {
    %c0_i32 = arith.constant 0 : i32
    %c0_i32_0 = arith.constant 0 : i32
    %c0_i32_1 = arith.constant 0 : i32
    return %c0_i32, %c0_i32_0 : i32, i32
  }
  func.func @transform_9(%arg0: i32, %arg1: memref<8xi32, #tpu.memory_space<smem>>) -> (i32, i32, i32) {
    %c0_i32 = arith.constant 0 : i32
    %c0_i32_0 = arith.constant 0 : i32
    %c0_i32_1 = arith.constant 0 : i32
    return %arg0, %c0_i32, %c0_i32_0 : i32, i32, i32
  }
  func.func @transform_10(%arg0: i32, %arg1: memref<8xi32, #tpu.memory_space<smem>>) -> (i32, i32, i32) {
    %c0_i32 = arith.constant 0 : i32
    %c0_i32_0 = arith.constant 0 : i32
    %c0_i32_1 = arith.constant 0 : i32
    return %arg0, %c0_i32, %c0_i32_0 : i32, i32, i32
  }
}

</mosaic_0001>

<llo_original>
// kernel: tpu_custom_call.1
$region0: #{tpu_custom_call.1}
  #allocation0 [shape = 'u32[]', space=smem, size = 0x4, offset = 0x4, fixed_abs, tag = 'smem constant byte address 0x4 - core index']
  #allocation1 [shape = 'u32[144,128]{1,0:T(1,128)}', space=vmem, size = 0x12000, scoped, tag = 'internal scratch']
  #allocation2 [shape = 's32[1]{0}', space=sflag, size = 0x4, scoped, tag = 'scoped memory for tpu_custom_call.1']
  #allocation3 [shape = 'u8[512]{0}', space=smem, size = 0x200, scoped, tag = 'prefetched SMEM operand 0']
  %s0 = inlined_call_operand.vmem [shape: s32[8], index: 0, kind: input, shape index: {}]
  %s1 = inlined_call_operand.hbm [shape: bf16[8,16,32], index: 1, kind: input, shape index: {}]
  %s2 = inlined_call_operand.vmem [shape: f32[2,4,24], index: 2, kind: input, shape index: {}]
  %s3 = inlined_call_operand.hbm [shape: bf16[32,32], index: 3, kind: input, shape index: {}]
  %s4 = inlined_call_operand.vmem [shape: f32[24,32], index: 4, kind: input, shape index: {}]
  %s5 = inlined_call_operand.vmem [shape: f32[1,32], index: 5, kind: input, shape index: {}]
  %s6 = inlined_call_operand.hbm [shape: f32[7,32], index: 6, kind: input, shape index: {}]
  %s7 = inlined_call_operand.vmem [shape: f32[1,32], index: 7, kind: input, shape index: {}]
  %s8 = inlined_call_operand.vmem [shape: bf16[32,16], index: 8, kind: input, shape index: {}]
  %s9 = inlined_call_operand.vmem [shape: f32[1,16], index: 9, kind: input, shape index: {}]
  %s10 = inlined_call_operand.hbm [shape: f32[2,4,16], index: 10, kind: output, shape index: {0}]
  %s11 = inlined_call_operand.hbm [shape: f32[2,4,16], index: 11, kind: output, shape index: {1}]
  %12 = xla_tuple %s10, %s11
  %s13 = sld [smem:[#allocation0]]
  $region89: #{tpu_custom_call.1} parent=0
    _
  %s15 = ssub.s32 1, %s13
  %s16 = scalar_select 0, %s15, %s13
  %s17 = sshll.u32 %s0, 4
  %s18 = int_to_ptr.vmem [resolvable:$true] %s17
  %20 = dma.vmem_to_smem %s18, 16, [#allocation3], [#allocation2]
  %21 = dma.done [#allocation2], 16
  %22 = sfence
  $region1: #{tpu_custom_call.1} parent=0
    #allocation4 [shape = 'u8[32768]{0}', space=vmem, size = 0x8000, scoped, tag = 'input window, operand 1']
    #allocation5 [shape = 's32[2]{0}', space=sflag, size = 0x8, scoped, tag = 'scoped memory for tpu_custom_call.1']
    #allocation6 [shape = 's32[2]{0}', space=sflag, size = 0x8, scoped, tag = 'scoped memory for tpu_custom_call.1']
    #allocation7 [shape = 'u8[8192]{0}', space=vmem, size = 0x2000, scoped, tag = 'input window, operand 3, single buffered']
    #allocation8 [shape = 's32[1]{0}', space=sflag, size = 0x4, scoped, tag = 'scoped memory for tpu_custom_call.1']
    #allocation9 [shape = 'u8[4096]{0}', space=vmem, size = 0x1000, scoped, tag = 'input window, operand 6, single buffered']
    #allocation10 [shape = 'u8[4096]{0}', space=vmem, size = 0x1000, scoped, tag = 'output window, operand 0']
    #allocation11 [shape = 'u8[4096]{0}', space=vmem, size = 0x1000, scoped, tag = 'output window, operand 1']
    #allocation12 [shape = 's32[2]{0}', space=sflag, size = 0x8, scoped, tag = 'scoped memory for tpu_custom_call.1']
    %23 = vsyncpa [#allocation5], 0
    %s24 = scalar_lea.sflag [#allocation5], 1
    %25 = vsyncpa %s24, 0
    %26 = vsyncpa [#allocation8], 0
    %27 = vsyncpa [#allocation6], 0
    %s28 = scalar_lea.sflag [#allocation6], 1
    %29 = vsyncpa %s28, 0
    %30 = vsyncpa [#allocation12], 0
    %s31 = scalar_lea.sflag [#allocation12], 1
    %32 = vsyncpa %s31, 0
    loop: start=0, step=1, limit=4
    $region2: #{tpu_custom_call.1} parent=1 // loop_pre_header
      _
    $region3: #{tpu_custom_call.1} parent=1 // loop_header
      %s34 = sphi 0, %s38
      %p35 = scmp.ge.s32.totalorder %s34, 4
      %s44 = sphi 0, %s46
      %s47 = sphi 0, %s44
      %s48 = sphi 0, %s47
      %s64 = sphi 0, %s48
      %s70 = sphi 0, %s72
      %s73 = sphi 0, %s70
      %s74 = sphi 0, %s73
      %s90 = sphi 0, %s74
      %s94 = sphi 0, %s94
      %s96 = sphi 0, %s94
      %s97 = sphi 0, %s96
      %s111 = sphi 0, %s97
      %s115 = sphi 0, %s115
      %s117 = sphi 0, %s115
      %s118 = sphi 0, %s117
      %s132 = sphi 0, %s118
      %s136 = sphi 0, %s136
      %s138 = sphi 0, %s136
      %s139 = sphi 0, %s138
      %s153 = sphi 0, %s139
      %s157 = sphi 0, %s157
      %s159 = sphi 0, %s157
      %s160 = sphi 0, %s159
      %s174 = sphi 0, %s160
      %s178 = sphi 0, %s178
      %s180 = sphi 0, %s178
      %s181 = sphi 0, %s180
      %s195 = sphi 0, %s181
      %s199 = sphi 0, %s199
      %s201 = sphi 0, %s199
      %s202 = sphi 0, %s201
      %s216 = sphi 0, %s202
      %s220 = sphi 0, %s220
      %s222 = sphi 0, %s220
      %s223 = sphi 0, %s222
      %s237 = sphi 0, %s223
      %s243 = sphi 0, %s245
      %s246 = sphi 0, %s243
      %s247 = sphi 0, %s246
      %s263 = sphi 0, %s247
      %s269 = sphi 0, %s271
      %s272 = sphi 0, %s269
      %s273 = sphi 0, %s272
      %s289 = sphi 0, %s273
    $region4: #{tpu_custom_call.1} parent=1 // loop_header_branch
      %37 = sbr.rel (%p35) target = $region8
    $region5: #{tpu_custom_call.1} parent=1 // loop_body
      %s39 = ssub.s32 %s34, 1
      %s40 = ssub.s32 %s34, 2
      %s41 = sadd.s32 %s34, 1
      %s42 = ssub.s32 %s34, %s41
      %p43 = scmp.eq.s32.totalorder %s42, 0
      %s45 = sadd.s32 %s44, 1
      %s46 = scalar_select %p43, %s44, %s45
      %p49 = pneg %p43
      %p50 = scmp.eq.s32.totalorder %s34, 1
      %p51 = por %p49, %p50
      %p52 = scmp.ne.s32.totalorder %s44, %s47
      %p53 = scmp.eq.s32.totalorder %s34, 0
      %p54 = por %p52, %p53
      %p55 = scmp.ne.s32.totalorder %s44, %s47
      %p56 = scmp.eq.s32.totalorder %s39, 1
      %p57 = por %p55, %p56
      %p58 = scmp.ne.s32.totalorder %s47, %s48
      %p59 = scmp.eq.s32.totalorder %s39, 0
      %p60 = por %p58, %p59
      %p61 = scmp.ne.s32.totalorder %s47, %s48
      %p62 = scmp.eq.s32.totalorder %s40, 1
      %p63 = por %p61, %p62
      %p65 = scmp.ne.s32.totalorder %s48, %s64
      %p66 = scmp.eq.s32.totalorder %s40, 0
      %p67 = por %p65, %p66
      %s68 = ssub.s32 %s34, %s41
      %p69 = scmp.eq.s32.totalorder %s68, 0
      %s71 = sadd.s32 %s70, 1
      %s72 = scalar_select %p69, %s70, %s71
      %p75 = pneg %p69
      %p76 = scmp.eq.s32.totalorder %s34, 1
      %p77 = por %p75, %p76
      %p78 = scmp.ne.s32.totalorder %s70, %s73
      %p79 = scmp.eq.s32.totalorder %s34, 0
      %p80 = por %p78, %p79
      %p81 = scmp.ne.s32.totalorder %s70, %s73
      %p82 = scmp.eq.s32.totalorder %s39, 1
      %p83 = por %p81, %p82
      %p84 = scmp.ne.s32.totalorder %s73, %s74
      %p85 = scmp.eq.s32.totalorder %s39, 0
      %p86 = por %p84, %p85
      %p87 = scmp.ne.s32.totalorder %s73, %s74
      %p88 = scmp.eq.s32.totalorder %s40, 1
      %p89 = por %p87, %p88
      %p91 = scmp.ne.s32.totalorder %s74, %s90
      %p92 = scmp.eq.s32.totalorder %s40, 0
      %p93 = por %p91, %p92
      %s95 = sadd.s32 %s94, 1
      %p98 = scmp.eq.s32.totalorder %s34, 1
      %p99 = scmp.ne.s32.totalorder %s94, %s96
      %p100 = scmp.eq.s32.totalorder %s34, 0
      %p101 = por %p99, %p100
      %p102 = scmp.ne.s32.totalorder %s94, %s96
      %p103 = scmp.eq.s32.totalorder %s39, 1
      %p104 = por %p102, %p103
      %p105 = scmp.ne.s32.totalorder %s96, %s97
      %p106 = scmp.eq.s32.totalorder %s39, 0
      %p107 = por %p105, %p106
      %p108 = scmp.ne.s32.totalorder %s96, %s97
      %p109 = scmp.eq.s32.totalorder %s40, 1
      %p110 = por %p108, %p109
      %p112 = scmp.ne.s32.totalorder %s97, %s111
      %p113 = scmp.eq.s32.totalorder %s40, 0
      %p114 = por %p112, %p113
      %s116 = sadd.s32 %s115, 1
      %p119 = scmp.eq.s32.totalorder %s34, 1
      %p120 = scmp.ne.s32.totalorder %s115, %s117
      %p121 = scmp.eq.s32.totalorder %s34, 0
      %p122 = por %p120, %p121
      %p123 = scmp.ne.s32.totalorder %s115, %s117
      %p124 = scmp.eq.s32.totalorder %s39, 1
      %p125 = por %p123, %p124
      %p126 = scmp.ne.s32.totalorder %s117, %s118
      %p127 = scmp.eq.s32.totalorder %s39, 0
      %p128 = por %p126, %p127
      %p129 = scmp.ne.s32.totalorder %s117, %s118
      %p130 = scmp.eq.s32.totalorder %s40, 1
      %p131 = por %p129, %p130
      %p133 = scmp.ne.s32.totalorder %s118, %s132
      %p134 = scmp.eq.s32.totalorder %s40, 0
      %p135 = por %p133, %p134
      %s137 = sadd.s32 %s136, 1
      %p140 = scmp.eq.s32.totalorder %s34, 1
      %p141 = scmp.ne.s32.totalorder %s136, %s138
      %p142 = scmp.eq.s32.totalorder %s34, 0
      %p143 = por %p141, %p142
      %p144 = scmp.ne.s32.totalorder %s136, %s138
      %p145 = scmp.eq.s32.totalorder %s39, 1
      %p146 = por %p144, %p145
      %p147 = scmp.ne.s32.totalorder %s138, %s139
      %p148 = scmp.eq.s32.totalorder %s39, 0
      %p149 = por %p147, %p148
      %p150 = scmp.ne.s32.totalorder %s138, %s139
      %p151 = scmp.eq.s32.totalorder %s40, 1
      %p152 = por %p150, %p151
      %p154 = scmp.ne.s32.totalorder %s139, %s153
      %p155 = scmp.eq.s32.totalorder %s40, 0
      %p156 = por %p154, %p155
      %s158 = sadd.s32 %s157, 1
      %p161 = scmp.eq.s32.totalorder %s34, 1
      %p162 = scmp.ne.s32.totalorder %s157, %s159
      %p163 = scmp.eq.s32.totalorder %s34, 0
      %p164 = por %p162, %p163
      %p165 = scmp.ne.s32.totalorder %s157, %s159
      %p166 = scmp.eq.s32.totalorder %s39, 1
      %p167 = por %p165, %p166
      %p168 = scmp.ne.s32.totalorder %s159, %s160
      %p169 = scmp.eq.s32.totalorder %s39, 0
      %p170 = por %p168, %p169
      %p171 = scmp.ne.s32.totalorder %s159, %s160
      %p172 = scmp.eq.s32.totalorder %s40, 1
      %p173 = por %p171, %p172
      %p175 = scmp.ne.s32.totalorder %s160, %s174
      %p176 = scmp.eq.s32.totalorder %s40, 0
      %p177 = por %p175, %p176
      %s179 = sadd.s32 %s178, 1
      %p182 = scmp.eq.s32.totalorder %s34, 1
      %p183 = scmp.ne.s32.totalorder %s178, %s180
      %p184 = scmp.eq.s32.totalorder %s34, 0
      %p185 = por %p183, %p184
      %p186 = scmp.ne.s32.totalorder %s178, %s180
      %p187 = scmp.eq.s32.totalorder %s39, 1
      %p188 = por %p186, %p187
      %p189 = scmp.ne.s32.totalorder %s180, %s181
      %p190 = scmp.eq.s32.totalorder %s39, 0
      %p191 = por %p189, %p190
      %p192 = scmp.ne.s32.totalorder %s180, %s181
      %p193 = scmp.eq.s32.totalorder %s40, 1
      %p194 = por %p192, %p193
      %p196 = scmp.ne.s32.totalorder %s181, %s195
      %p197 = scmp.eq.s32.totalorder %s40, 0
      %p198 = por %p196, %p197
      %s200 = sadd.s32 %s199, 1
      %p203 = scmp.eq.s32.totalorder %s34, 1
      %p204 = scmp.ne.s32.totalorder %s199, %s201
      %p205 = scmp.eq.s32.totalorder %s34, 0
      %p206 = por %p204, %p205
      %p207 = scmp.ne.s32.totalorder %s199, %s201
      %p208 = scmp.eq.s32.totalorder %s39, 1
      %p209 = por %p207, %p208
      %p210 = scmp.ne.s32.totalorder %s201, %s202
      %p211 = scmp.eq.s32.totalorder %s39, 0
      %p212 = por %p210, %p211
      %p213 = scmp.ne.s32.totalorder %s201, %s202
      %p214 = scmp.eq.s32.totalorder %s40, 1
      %p215 = por %p213, %p214
      %p217 = scmp.ne.s32.totalorder %s202, %s216
      %p218 = scmp.eq.s32.totalorder %s40, 0
      %p219 = por %p217, %p218
      %s221 = sadd.s32 %s220, 1
      %p224 = scmp.eq.s32.totalorder %s34, 1
      %p225 = scmp.ne.s32.totalorder %s220, %s222
      %p226 = scmp.eq.s32.totalorder %s34, 0
      %p227 = por %p225, %p226
      %p228 = scmp.ne.s32.totalorder %s220, %s222
      %p229 = scmp.eq.s32.totalorder %s39, 1
      %p230 = por %p228, %p229
      %p231 = scmp.ne.s32.totalorder %s222, %s223
      %p232 = scmp.eq.s32.totalorder %s39, 0
      %p233 = por %p231, %p232
      %p234 = scmp.ne.s32.totalorder %s222, %s223
      %p235 = scmp.eq.s32.totalorder %s40, 1
      %p236 = por %p234, %p235
      %p238 = scmp.ne.s32.totalorder %s223, %s237
      %p239 = scmp.eq.s32.totalorder %s40, 0
      %p240 = por %p238, %p239
      %s241 = ssub.s32 %s34, %s41
      %p242 = scmp.eq.s32.totalorder %s241, 0
      %s244 = sadd.s32 %s243, 1
      %s245 = scalar_select %p242, %s243, %s244
      %p248 = pneg %p242
      %p249 = scmp.eq.s32.totalorder %s34, 1
      %p250 = por %p248, %p249
      %p251 = scmp.ne.s32.totalorder %s243, %s246
      %p252 = scmp.eq.s32.totalorder %s34, 0
      %p253 = por %p251, %p252
      %p254 = scmp.ne.s32.totalorder %s243, %s246
      %p255 = scmp.eq.s32.totalorder %s39, 1
      %p256 = por %p254, %p255
      %p257 = scmp.ne.s32.totalorder %s246, %s247
      %p258 = scmp.eq.s32.totalorder %s39, 0
      %p259 = por %p257, %p258
      %p260 = scmp.ne.s32.totalorder %s246, %s247
      %p261 = scmp.eq.s32.totalorder %s40, 1
      %p262 = por %p260, %p261
      %p264 = scmp.ne.s32.totalorder %s247, %s263
      %p265 = scmp.eq.s32.totalorder %s40, 0
      %p266 = por %p264, %p265
      %s267 = ssub.s32 %s34, %s41
      %p268 = scmp.eq.s32.totalorder %s267, 0
      %s270 = sadd.s32 %s269, 1
      %s271 = scalar_select %p268, %s269, %s270
      %p274 = pneg %p268
      %p275 = scmp.eq.s32.totalorder %s34, 1
      %p276 = por %p274, %p275
      %p277 = scmp.ne.s32.totalorder %s269, %s272
      %p278 = scmp.eq.s32.totalorder %s34, 0
      %p279 = por %p277, %p278
      %p280 = scmp.ne.s32.totalorder %s269, %s272
      %p281 = scmp.eq.s32.totalorder %s39, 1
      %p282 = por %p280, %p281
      %p283 = scmp.ne.s32.totalorder %s272, %s273
      %p284 = scmp.eq.s32.totalorder %s39, 0
      %p285 = por %p283, %p284
      %p286 = scmp.ne.s32.totalorder %s272, %s273
      %p287 = scmp.eq.s32.totalorder %s40, 1
      %p288 = por %p286, %p287
      %p290 = scmp.ne.s32.totalorder %s273, %s289
      %p291 = scmp.eq.s32.totalorder %s40, 0
      %p292 = por %p290, %p291
      %p293 = scmp.le.s32.totalorder 1, %s34
      %p294 = scmp.lt.s32.totalorder %s34, 3
      %p295 = pnand %p293, %p294
      %p296 = pneg %p295
      // Predicated region
      $region9: #{tpu_custom_call.1} parent=5 // pred_check
        _
      $region10: #{tpu_custom_call.1} parent=5 // pred_check_branch
        %298 = sbr.rel (%p295) target = $region12
      $region11: #{tpu_custom_call.1} parent=5 // pred_region
        %s299 = ssub.s32 %s34, 1
        // Predicated region
        $region13: #{tpu_custom_call.1} parent=11 // pred_check
          %p300 = pneg %p107
        $region14: #{tpu_custom_call.1} parent=11 // pred_check_branch
          %302 = sbr.rel (%p300) target = $region16
        $region15: #{tpu_custom_call.1} parent=11 // pred_region
          %s304 = ssub.s32 256, 256
          %305 = vsyncadd [#allocation8], %s304
          %s306 = sshll.u32 [#allocation7], 4
          %s307 = int_to_ptr.vmem [resolvable:$true] %s306
          %312 = dma.hbm_to_vmem [thread:$0]  %s3, 256, %s307, [#allocation8], 64, 64, 4
        $region16: #{tpu_custom_call.1} parent=11 // pred_fallthru
          _
        // Predicated region
        $region17: #{tpu_custom_call.1} parent=11 // pred_check
          %p313 = pneg %p128
        $region18: #{tpu_custom_call.1} parent=11 // pred_check_branch
          %315 = sbr.rel (%p313) target = $region20
        $region19: #{tpu_custom_call.1} parent=11 // pred_region
          _
        $region20: #{tpu_custom_call.1} parent=11 // pred_fallthru
          _
        // Predicated region
        $region21: #{tpu_custom_call.1} parent=11 // pred_check
          %p316 = pneg %p149
        $region22: #{tpu_custom_call.1} parent=11 // pred_check_branch
          %318 = sbr.rel (%p316) target = $region24
        $region23: #{tpu_custom_call.1} parent=11 // pred_region
          _
        $region24: #{tpu_custom_call.1} parent=11 // pred_fallthru
          _
        // Predicated region
        $region25: #{tpu_custom_call.1} parent=11 // pred_check
          %p319 = pneg %p170
        $region26: #{tpu_custom_call.1} parent=11 // pred_check_branch
          %321 = sbr.rel (%p319) target = $region28
        $region27: #{tpu_custom_call.1} parent=11 // pred_region
          %s323 = ssub.s32 128, 128
          %324 = vsyncadd [#allocation8], %s323
          %s326 = sshll.u32 [#allocation9], 4
          %s327 = int_to_ptr.vmem [resolvable:$true] %s326
          %329 = dma.hbm_to_vmem [thread:$0]  %s6, 128, %s327, [#allocation8]
        $region28: #{tpu_custom_call.1} parent=11 // pred_fallthru
          _
        // Predicated region
        $region29: #{tpu_custom_call.1} parent=11 // pred_check
          %p330 = pneg %p191
        $region30: #{tpu_custom_call.1} parent=11 // pred_check_branch
          %332 = sbr.rel (%p330) target = $region32
        $region31: #{tpu_custom_call.1} parent=11 // pred_region
          _
        $region32: #{tpu_custom_call.1} parent=11 // pred_fallthru
          _
        // Predicated region
        $region33: #{tpu_custom_call.1} parent=11 // pred_check
          %p333 = pneg %p212
        $region34: #{tpu_custom_call.1} parent=11 // pred_check_branch
          %335 = sbr.rel (%p333) target = $region36
        $region35: #{tpu_custom_call.1} parent=11 // pred_region
          _
        $region36: #{tpu_custom_call.1} parent=11 // pred_fallthru
          _
        // Predicated region
        $region37: #{tpu_custom_call.1} parent=11 // pred_check
          %p336 = pneg %p233
        $region38: #{tpu_custom_call.1} parent=11 // pred_check_branch
          %338 = sbr.rel (%p336) target = $region40
        $region39: #{tpu_custom_call.1} parent=11 // pred_region
          _
        $region40: #{tpu_custom_call.1} parent=11 // pred_fallthru
          _
      $region12: #{tpu_custom_call.1} parent=5 // pred_fallthru
        _
      %p339 = scmp.lt.s32.totalorder %s34, 2
      // Predicated region
      $region41: #{tpu_custom_call.1} parent=5 // pred_check
        %p340 = pneg %p339
      $region42: #{tpu_custom_call.1} parent=5 // pred_check_branch
        %342 = sbr.rel (%p340) target = $region44
      $region43: #{tpu_custom_call.1} parent=5 // pred_region
        // Predicated region
        $region45: #{tpu_custom_call.1} parent=43 // pred_check
          %p343 = pneg %p54
        $region46: #{tpu_custom_call.1} parent=43 // pred_check_branch
          %345 = sbr.rel (%p343) target = $region48
        $region47: #{tpu_custom_call.1} parent=43 // pred_region
          %s346 = sand.u32 %s44, 1
          %s347 = scalar_lea.sflag [#allocation5], %s346
          %s348 = sand.u32 %s44, 1
          %s349 = smul.addr %s348, 32
          %s350 = scalar_lea.vmem [#allocation4], %s349
          %s351 = smul.u32 4, %s34
          %s353 = ssub.s32 512, 512
          %354 = vsyncadd %s347, %s353
          %s355 = smul.addr %s351, 2
          %s356 = smul.addr %s355, 64
          %s357 = scalar_lea.hbm %s1, %s356
          %s358 = sshll.u32 %s350, 4
          %s359 = int_to_ptr.vmem [resolvable:$true] %s358
          %364 = dma.hbm_to_vmem [thread:$0]  %s357, 512, %s359, %s347, 64, 64, 4
        $region48: #{tpu_custom_call.1} parent=43 // pred_fallthru
          _
        // Predicated region
        $region49: #{tpu_custom_call.1} parent=43 // pred_check
          %p365 = pneg %p80
        $region50: #{tpu_custom_call.1} parent=43 // pred_check_branch
          %367 = sbr.rel (%p365) target = $region52
        $region51: #{tpu_custom_call.1} parent=43 // pred_region
          %p368 = scmp.lt.s32.totalorder %s34, 1
          %s369 = scalar_select %p368, %s34, 1
          %s370 = smul.addr %s369, 4
          %s371 = scalar_lea.vmem %s2, %s370
        $region52: #{tpu_custom_call.1} parent=43 // pred_fallthru
          _
      $region44: #{tpu_custom_call.1} parent=5 // pred_fallthru
        _
      %p372 = scmp.le.s32.totalorder 1, %s34
      %p373 = scmp.lt.s32.totalorder %s34, 3
      %p374 = pnand %p372, %p373
      %p375 = pneg %p374
      // Predicated region
      $region53: #{tpu_custom_call.1} parent=5 // pred_check
        _
      $region54: #{tpu_custom_call.1} parent=5 // pred_check_branch
        %377 = sbr.rel (%p374) target = $region56
      $region55: #{tpu_custom_call.1} parent=5 // pred_region
        %s378 = ssub.s32 %s34, 1
        %s379 = sand.u32 %s47, 1
        %s380 = scalar_lea.sflag [#allocation5], %s379
        %s381 = sand.u32 %s47, 1
        %s382 = smul.addr %s381, 32
        %s383 = scalar_lea.vmem [#allocation4], %s382
        // Predicated region
        $region57: #{tpu_custom_call.1} parent=55 // pred_check
          %p384 = pneg %p60
        $region58: #{tpu_custom_call.1} parent=55 // pred_check_branch
          %386 = sbr.rel (%p384) target = $region60
        $region59: #{tpu_custom_call.1} parent=55 // pred_region
          %387 = dma.done %s380, 512
        $region60: #{tpu_custom_call.1} parent=55 // pred_fallthru
          _
        // Predicated region
        $region61: #{tpu_custom_call.1} parent=55 // pred_check
          %p388 = pneg %p107
        $region62: #{tpu_custom_call.1} parent=55 // pred_check_branch
          %390 = sbr.rel (%p388) target = $region64
        $region63: #{tpu_custom_call.1} parent=55 // pred_region
          %391 = dma.done [#allocation8], 256
        $region64: #{tpu_custom_call.1} parent=55 // pred_fallthru
          _
        // Predicated region
        $region65: #{tpu_custom_call.1} parent=55 // pred_check
          %p392 = pneg %p170
        $region66: #{tpu_custom_call.1} parent=55 // pred_check_branch
          %394 = sbr.rel (%p392) target = $region68
        $region67: #{tpu_custom_call.1} parent=55 // pred_region
          %395 = dma.done [#allocation8], 128
        $region68: #{tpu_custom_call.1} parent=55 // pred_fallthru
          _
        %s396 = sand.u32 %s47, 1
        %s397 = scalar_lea.sflag [#allocation5], %s396
        %s398 = sand.u32 %s47, 1
        %s399 = smul.addr %s398, 32
        %s400 = scalar_lea.vmem [#allocation4], %s399
        %p401 = pneg %p60
        %p402 = pneg %p57
        %p403 = scmp.lt.s32.totalorder %s39, 1
        %s404 = scalar_select %p403, %s39, 1
        %s405 = smul.addr %s404, 4
        %s406 = scalar_lea.vmem %s2, %s405
        %p407 = pneg %p86
        %p408 = pneg %p83
        %p409 = pneg %p107
        %p410 = pneg %p104
        %p411 = pneg %p128
        %p412 = pneg %p125
        %p413 = pneg %p149
        %p414 = pneg %p146
        %p415 = pneg %p170
        %p416 = pneg %p167
        %p417 = pneg %p191
        %p418 = pneg %p188
        %p419 = pneg %p212
        %p420 = pneg %p209
        %p421 = pneg %p233
        %p422 = pneg %p230
        %p423 = pneg %p259
        %p424 = pneg %p256
        %s425 = sand.u32 %s246, 1
        %s426 = scalar_lea.sflag [#allocation6], %s425
        %s427 = sand.u32 %s246, 1
        %s428 = smul.addr %s427, 4
        %s429 = scalar_lea.vmem [#allocation10], %s428
        %p430 = pneg %p285
        %p431 = pneg %p282
        %s432 = sand.u32 %s272, 1
        %s433 = scalar_lea.sflag [#allocation12], %s432
        %s434 = sand.u32 %s272, 1
        %s435 = smul.addr %s434, 4
        %s436 = scalar_lea.vmem [#allocation11], %s435
        %s437 = smul.u32 4, %s39
        %p438 = scmp.lt.s32.totalorder %s39, 1
        %s439 = scalar_select %p438, %s39, 1
        %s440 = smul.addr %s439, 4
        %s441 = scalar_lea.vmem %s2, %s440
        %v443 = vld [vmem:[%s383] sm:$0xf]
        %v444 = vld [vmem:[%s383 + $0x4] sm:$0xf]
        %v445 = vld [vmem:[%s383 + $0x8] sm:$0xf]
        %v446 = vld [vmem:[%s383 + $0xc] sm:$0xf]
        %v447 = vld [vmem:[%s383 + $0x10] sm:$0xf]
        %v448 = vld [vmem:[%s383 + $0x14] sm:$0xf]
        %v449 = vld [vmem:[%s383 + $0x18] sm:$0xf]
        %v450 = vld [vmem:[%s383 + $0x1c] sm:$0xf]
        %v451 = vld [vmem:[#allocation7] sm:$0xf]
        %v452 = vld [vmem:[#allocation7 + $0x4] sm:$0xf]
        %v453 = vld [vmem:[#allocation7 + $0x8] sm:$0xf]
        %v454 = vld [vmem:[#allocation7 + $0xc] sm:$0xf]
        %v463 = vunpack.c.l.b16 %v443
        %v464 = vunpack.c.l.b16 %v444
        %v465 = vunpack.c.l.b16 %v445
        %v466 = vunpack.c.l.b16 %v446
        %v467 = vunpack.c.l.b16 %v447
        %v468 = vunpack.c.l.b16 %v448
        %v469 = vunpack.c.l.b16 %v449
        %v470 = vunpack.c.l.b16 %v450
        %v471 = vpack.c.b16 %v464, %v463
        %v472 = vpack.c.b16 %v466, %v465
        %v473 = vpack.c.b16 %v468, %v467
        %v474 = vpack.c.b16 %v470, %v469
        %v479 = vunpack.c.l.b16 %v451
        %v480 = vunpack.c.l.b16 %v452
        %v481 = vunpack.c.l.b16 %v453
        %v482 = vunpack.c.l.b16 %v454
        %v483 = vpack.c.b16 %v480, %v479
        %v484 = vpack.c.b16 %v482, %v481
        %vm487 = vcmask 261120
        %v489 = vsel %vm487, %v471, 0
        %v492 = vsel %vm487, %v472, 0
        %v495 = vsel %vm487, %v473, 0
        %v498 = vsel %vm487, %v474, 0
        %500 = vmatprep.subr.bf16.mxu0 0
        %501 = vmatpush1.bf16.msra.mxu0 %v483
        %502 = vmatprep.subr.bf16.mxu0 0
        %503 = vmatpush1.bf16.msra.mxu0 %v484
        %504 = vmatprep.subr.bf16.mxu0 0
        %505 = vmatpush1.bf16.msra.mxu0 0
        %506 = vmatprep.subr.bf16.mxu0 0
        %507 = vmatpush1.bf16.msra.mxu0 0
        %508 = vmatprep.subr.bf16.mxu0 0
        %509 = vmatpush1.bf16.msra.mxu0 0
        %510 = vmatprep.subr.bf16.mxu0 0
        %511 = vmatpush1.bf16.msra.mxu0 0
        %512 = vmatprep.subr.bf16.mxu0 0
        %513 = vmatpush1.bf16.msra.mxu0 0
        %514 = vmatprep.subr.bf16.mxu0 0
        %515 = vmatpush1.bf16.msra.mxu0 0
        %516 = vmatprep.subr.bf16.mxu0 0
        %517 = vmatpush1.bf16.msra.mxu0 0
        %518 = vmatprep.subr.bf16.mxu0 0
        %519 = vmatpush1.bf16.msra.mxu0 0
        %520 = vmatprep.subr.bf16.mxu0 0
        %521 = vmatpush1.bf16.msra.mxu0 0
        %522 = vmatprep.subr.bf16.mxu0 0
        %523 = vmatpush1.bf16.msra.mxu0 0
        %524 = vmatprep.subr.bf16.mxu0 0
        %525 = vmatpush1.bf16.msra.mxu0 0
        %526 = vmatprep.subr.bf16.mxu0 0
        %527 = vmatpush1.bf16.msra.mxu0 0
        %528 = vmatprep.subr.bf16.mxu0 0
        %529 = vmatpush1.bf16.msra.mxu0 0
        %530 = vmatprep.subr.bf16.mxu0 0
        %531 = vmatpush1.bf16.msra.mxu0 0
        %532 = vmatprep.mubr.bf16.mxu0 0
        %533 = vmatmul.mubr.bf16.gmra.mrb[0].mxu0 %v489
        %v534 = vpop.f32.mrb[0].mxu0
        %v535 = vadd.f32 0.0, %v534
        %v536 = vpop.f32.mrb[0].mxu0
        %v537 = vpop.f32.mrb[0].mxu0
        %v538 = vadd.f32 0.0, %v537
        %v539 = vpop.f32.mrb[0].mxu0
        %540 = vmatprep.mubr.bf16.mxu0 0
        %541 = vmatmul.mubr.bf16.gmra.mrb[0].mxu0 %v492
        %v542 = vpop.f32.mrb[0].mxu0
        %v543 = vadd.f32 0.0, %v542
        %v544 = vpop.f32.mrb[0].mxu0
        %v545 = vpop.f32.mrb[0].mxu0
        %v546 = vadd.f32 0.0, %v545
        %v547 = vpop.f32.mrb[0].mxu0
        %548 = vmatprep.mubr.bf16.mxu0 0
        %549 = vmatmul.mubr.bf16.gmra.mrb[0].mxu0 %v495
        %v550 = vpop.f32.mrb[0].mxu0
        %v551 = vadd.f32 0.0, %v550
        %v552 = vpop.f32.mrb[0].mxu0
        %v553 = vpop.f32.mrb[0].mxu0
        %v554 = vadd.f32 0.0, %v553
        %v555 = vpop.f32.mrb[0].mxu0
        %556 = vmatprep.mubr.bf16.mxu0 0
        %557 = vmatmul.mubr.bf16.gmra.mrb[0].mxu0 %v498
        %v558 = vpop.f32.mrb[0].mxu0
        %v559 = vadd.f32 0.0, %v558
        %v560 = vpop.f32.mrb[0].mxu0
        %v561 = vpop.f32.mrb[0].mxu0
        %v562 = vadd.f32 0.0, %v561
        %v563 = vpop.f32.mrb[0].mxu0
        %564 = vdwg.mxu0
        %v565 = vld [vmem:[%s441] sm:$0xf]
        %v566 = vld [vmem:[%s4] sm:$0xff]
        %v567 = vld [vmem:[%s4 + $0x8] sm:$0xff]
        %v568 = vld [vmem:[%s4 + $0x10] sm:$0xff]
        %v569 = vld [vmem:[%s5] sm:$0x1]
        %v571 = vlaneseq
        %v572 = vshrl.u32 %v571, 7
        %v573 = vsub.s32 0, %v572
        %v574 = vrot.slane %v569, %v573
        %vm576 = vcmask 195584
        %v578 = vsel %vm576, %v565, 0
        %580 = vmatprep.subr.mxu0 0.0
        %581 = vmatpush1.msra.mxu0 %v566
        %582 = vmatprep.subr.mxu0 0.0
        %583 = vmatpush1.msra.mxu0 %v567
        %584 = vmatprep.subr.mxu0 0.0
        %585 = vmatpush1.msra.mxu0 %v568
        %586 = vmatprep.subr.mxu0 0.0
        %587 = vmatpush1.msra.mxu0 0.0
        %588 = vmatprep.subr.mxu0 0.0
        %589 = vmatpush1.msra.mxu0 0.0
        %590 = vmatprep.subr.mxu0 0.0
        %591 = vmatpush1.msra.mxu0 0.0
        %592 = vmatprep.subr.mxu0 0.0
        %593 = vmatpush1.msra.mxu0 0.0
        %594 = vmatprep.subr.mxu0 0.0
        %595 = vmatpush1.msra.mxu0 0.0
        %596 = vmatprep.subr.mxu0 0.0
        %597 = vmatpush1.msra.mxu0 0.0
        %598 = vmatprep.subr.mxu0 0.0
        %599 = vmatpush1.msra.mxu0 0.0
        %600 = vmatprep.subr.mxu0 0.0
        %601 = vmatpush1.msra.mxu0 0.0
        %602 = vmatprep.subr.mxu0 0.0
        %603 = vmatpush1.msra.mxu0 0.0
        %604 = vmatprep.subr.mxu0 0.0
        %605 = vmatpush1.msra.mxu0 0.0
        %606 = vmatprep.subr.mxu0 0.0
        %607 = vmatpush1.msra.mxu0 0.0
        %608 = vmatprep.subr.mxu0 0.0
        %609 = vmatpush1.msra.mxu0 0.0
        %610 = vmatprep.subr.mxu0 0.0
        %611 = vmatpush1.msra.mxu0 0.0
        %612 = vmatprep.subr.mxu0 0.0
        %613 = vmatpush1.msra.mxu0 0.0
        %614 = vmatprep.subr.mxu0 0.0
        %615 = vmatpush1.msra.mxu0 0.0
        %616 = vmatprep.subr.mxu0 0.0
        %617 = vmatpush1.msra.mxu0 0.0
        %618 = vmatprep.subr.mxu0 0.0
        %619 = vmatpush1.msra.mxu0 0.0
        %620 = vmatprep.subr.mxu0 0.0
        %621 = vmatpush1.msra.mxu0 0.0
        %622 = vmatprep.subr.mxu0 0.0
        %623 = vmatpush1.msra.mxu0 0.0
        %624 = vmatprep.subr.mxu0 0.0
        %625 = vmatpush1.msra.mxu0 0.0
        %626 = vmatprep.subr.mxu0 0.0
        %627 = vmatpush1.msra.mxu0 0.0
        %628 = vmatprep.subr.mxu0 0.0
        %629 = vmatpush1.msra.mxu0 0.0
        %630 = vmatprep.subr.mxu0 0.0
        %631 = vmatpush1.msra.mxu0 0.0
        %632 = vmatprep.subr.mxu0 0.0
        %633 = vmatpush1.msra.mxu0 0.0
        %634 = vmatprep.subr.mxu0 0.0
        %635 = vmatpush1.msra.mxu0 0.0
        %636 = vmatprep.subr.mxu0 0.0
        %637 = vmatpush1.msra.mxu0 0.0
        %638 = vmatprep.subr.mxu0 0.0
        %639 = vmatpush1.msra.mxu0 0.0
        %640 = vmatprep.subr.mxu0 0.0
        %641 = vmatpush1.msra.mxu0 0.0
        %642 = vmatprep.subr.mxu0 0.0
        %643 = vmatpush1.msra.mxu0 0.0
        %644 = vmatprep.mubr.f32.mxu0 0.0
        %645 = vmatmul.mubr.f32.gmra.mrb[0].mxu0 %v578
        %v646 = vpop.f32.mrb[0].mxu0
        %v647 = vadd.f32 %v574, %v646
        %v648 = vpop.f32.mrb[0].mxu0
        %649 = vdwg.mxu0
        %v650 = vlaneseq
        %v651 = vand.u32 %v650, 127
        %s652 = smul.u32 %s39, 4
        %s653 = sld [smem:[#allocation3 + %s652]]
        %s654 = scvt.s32.f32 %s653
        %v655 = vstv %s653
        %vm656 = vcmp.lt.s32.totalorder %v651, %v655
        %v657 = vsel %vm656, 1, 0
        %v658 = vcvt.s32.f32 %v657
        %v659 = vstv %s654
        %v660 = vrcp.pop %v659
        %s661 = vtos %v660
        %v662 = vstv %s661
        %v663 = vmul.f32 %v658, %v662
        %665 = vrot.lane.b32.xlu0 %v663, 3
        %v666 = vpop.permute.xlu0 %665
        %vm668 = vcmask 23552
        %v669 = vsel %vm668, 0.0, %v666
        %vm670 = vcmask 154624
        %v671 = vsel %vm670, %v669, 0.0
        %v673 = vrot.slane %v671, 7
        %674 = vrot.lane.b32.xlu0 %v673, 127
        %v675 = vpop.permute.xlu0 %674
        %v677 = vrot.slane %v671, 6
        %678 = vrot.lane.b32.xlu0 %v677, 126
        %v679 = vpop.permute.xlu0 %678
        %v681 = vrot.slane %v671, 5
        %682 = vrot.lane.b32.xlu0 %v681, 125
        %v683 = vpop.permute.xlu0 %682
        %v685 = vrot.slane %v671, 4
        %686 = vrot.lane.b32.xlu0 %v685, 124
        %v687 = vpop.permute.xlu0 %686
        %v689 = vrot.slane %v671, 3
        %690 = vrot.lane.b32.xlu0 %v689, 123
        %v691 = vpop.permute.xlu0 %690
        %v693 = vrot.slane %v671, 2
        %694 = vrot.lane.b32.xlu0 %v693, 122
        %v695 = vpop.permute.xlu0 %694
        %vm697 = vcmask 1040384
        %v698 = vsel %vm697, %v671, %v675
        %vm699 = vcmask 1041408
        %v700 = vsel %vm699, %v698, %v679
        %vm701 = vcmask 1042432
        %v702 = vsel %vm701, %v700, %v683
        %vm703 = vcmask 1043456
        %v704 = vsel %vm703, %v702, %v687
        %vm705 = vcmask 1044480
        %v706 = vsel %vm705, %v704, %v691
        %vm707 = vcmask 1045504
        %v708 = vsel %vm707, %v706, %v695
        %v709 = vld [vmem:[#allocation9] sm:$0x7f]
        %710 = vxpose.xlu0.b32.start [1/16] %v708, 128
        %711 = vxpose.xlu0.b32.cont [2/16] 0.0, 128
        %712 = vxpose.xlu0.b32.cont [3/16] 0.0, 128
        %713 = vxpose.xlu0.b32.cont [4/16] 0.0, 128
        %714 = vxpose.xlu0.b32.cont [5/16] 0.0, 128
        %715 = vxpose.xlu0.b32.cont [6/16] 0.0, 128
        %716 = vxpose.xlu0.b32.cont [7/16] 0.0, 128
        %717 = vxpose.xlu0.b32.cont [8/16] 0.0, 128
        %718 = vxpose.xlu0.b32.cont [9/16] 0.0, 128
        %719 = vxpose.xlu0.b32.cont [10/16] 0.0, 128
        %720 = vxpose.xlu0.b32.cont [11/16] 0.0, 128
        %721 = vxpose.xlu0.b32.cont [12/16] 0.0, 128
        %722 = vxpose.xlu0.b32.cont [13/16] 0.0, 128
        %723 = vxpose.xlu0.b32.cont [14/16] 0.0, 128
        %724 = vxpose.xlu0.b32.cont [15/16] 0.0, 128
        %725 = vxpose.xlu0.b32.end [16/16] 0.0, 128
        %v726 = vpop.trf.xlu0
        %v727 = vpop.trf.xlu0
        %v728 = vpop.trf.xlu0
        %v729 = vpop.trf.xlu0
        %v730 = vpop.trf.xlu0
        %v731 = vpop.trf.xlu0
        %v732 = vpop.trf.xlu0
        %v733 = vpop.trf.xlu0
        %v734 = vpop.trf.xlu0
        %v735 = vpop.trf.xlu0
        %v736 = vpop.trf.xlu0
        %v737 = vpop.trf.xlu0
        %v738 = vpop.trf.xlu0
        %v739 = vpop.trf.xlu0
        %v740 = vpop.trf.xlu0
        %v741 = vpop.trf.xlu0
        %vm742 = vcmask 56320
        %v744 = vsel %vm742, %v726, 0
        %v747 = vsel %vm742, %v727, 0
        %vm749 = vcmask 1046528
        %v751 = vsel %vm749, %v709, 0
        %753 = vmatprep.subr.mxu0 0.0
        %754 = vmatpush1.msra.mxu0 %v751
        %755 = vmatprep.subr.mxu0 0.0
        %756 = vmatpush1.msra.mxu0 0.0
        %757 = vmatprep.subr.mxu0 0.0
        %758 = vmatpush1.msra.mxu0 0.0
        %759 = vmatprep.subr.mxu0 0.0
        %760 = vmatpush1.msra.mxu0 0.0
        %761 = vmatprep.subr.mxu0 0.0
        %762 = vmatpush1.msra.mxu0 0.0
        %763 = vmatprep.subr.mxu0 0.0
        %764 = vmatpush1.msra.mxu0 0.0
        %765 = vmatprep.subr.mxu0 0.0
        %766 = vmatpush1.msra.mxu0 0.0
        %767 = vmatprep.subr.mxu0 0.0
        %768 = vmatpush1.msra.mxu0 0.0
        %769 = vmatprep.subr.mxu0 0.0
        %770 = vmatpush1.msra.mxu0 0.0
        %771 = vmatprep.subr.mxu0 0.0
        %772 = vmatpush1.msra.mxu0 0.0
        %773 = vmatprep.subr.mxu0 0.0
        %774 = vmatpush1.msra.mxu0 0.0
        %775 = vmatprep.subr.mxu0 0.0
        %776 = vmatpush1.msra.mxu0 0.0
        %777 = vmatprep.subr.mxu0 0.0
        %778 = vmatpush1.msra.mxu0 0.0
        %779 = vmatprep.subr.mxu0 0.0
        %780 = vmatpush1.msra.mxu0 0.0
        %781 = vmatprep.subr.mxu0 0.0
        %782 = vmatpush1.msra.mxu0 0.0
        %783 = vmatprep.subr.mxu0 0.0
        %784 = vmatpush1.msra.mxu0 0.0
        %785 = vmatprep.subr.mxu0 0.0
        %786 = vmatpush1.msra.mxu0 0.0
        %787 = vmatprep.subr.mxu0 0.0
        %788 = vmatpush1.msra.mxu0 0.0
        %789 = vmatprep.subr.mxu0 0.0
        %790 = vmatpush1.msra.mxu0 0.0
        %791 = vmatprep.subr.mxu0 0.0
        %792 = vmatpush1.msra.mxu0 0.0
        %793 = vmatprep.subr.mxu0 0.0
        %794 = vmatpush1.msra.mxu0 0.0
        %795 = vmatprep.subr.mxu0 0.0
        %796 = vmatpush1.msra.mxu0 0.0
        %797 = vmatprep.subr.mxu0 0.0
        %798 = vmatpush1.msra.mxu0 0.0
        %799 = vmatprep.subr.mxu0 0.0
        %800 = vmatpush1.msra.mxu0 0.0
        %801 = vmatprep.subr.mxu0 0.0
        %802 = vmatpush1.msra.mxu0 0.0
        %803 = vmatprep.subr.mxu0 0.0
        %804 = vmatpush1.msra.mxu0 0.0
        %805 = vmatprep.subr.mxu0 0.0
        %806 = vmatpush1.msra.mxu0 0.0
        %807 = vmatprep.subr.mxu0 0.0
        %808 = vmatpush1.msra.mxu0 0.0
        %809 = vmatprep.subr.mxu0 0.0
        %810 = vmatpush1.msra.mxu0 0.0
        %811 = vmatprep.subr.mxu0 0.0
        %812 = vmatpush1.msra.mxu0 0.0
        %813 = vmatprep.subr.mxu0 0.0
        %814 = vmatpush1.msra.mxu0 0.0
        %815 = vmatprep.subr.mxu0 0.0
        %816 = vmatpush1.msra.mxu0 0.0
        %817 = vmatprep.mubr.f32.mxu0 0.0
        %818 = vmatmul.mubr.f32.gmra.mrb[0].mxu0 %v744
        %v819 = vpop.f32.mrb[0].mxu0
        %v820 = vadd.f32 0.0, %v819
        %v821 = vpop.f32.mrb[0].mxu0
        %822 = vmatprep.mubr.f32.mxu0 0.0
        %823 = vmatmul.mubr.f32.gmra.mrb[0].mxu0 %v747
        %v824 = vpop.f32.mrb[0].mxu0
        %v825 = vadd.f32 0.0, %v824
        %v826 = vpop.f32.mrb[0].mxu0
        %827 = vdwg.mxu0
        %v828 = vlaneseq
        %v829 = vshrl.u32 %v828, 7
        %v830 = vsub.s32 0, %v829
        %v831 = vrot.slane %v647, %v830
        %v832 = vadd.f32 %v535, %v831
        %v833 = vadd.f32 %v538, %v831
        %v834 = vadd.f32 %v832, %v820
        %v835 = vadd.f32 %v833, %v825
        %v836 = vtanh.pop %v834
        %v837 = vtanh.pop %v835
        %v838 = vld [vmem:[%s7] sm:$0x1]
        %v840 = vsel %vm487, %v838, 0
        %v843 = vsel %vm487, %v836, 0
        %v846 = vsel %vm487, %v837, 0
        %848 = vmatprep.subr.mxu0 0.0
        %849 = vmatpush1.xpose.msra.mxu0 %v843
        %850 = vmatprep.subr.mxu0 0.0
        %851 = vmatpush1.xpose.msra.mxu0 %v846
        %852 = vmatprep.subr.mxu0 0.0
        %853 = vmatpush1.xpose.msra.mxu0 0.0
        %854 = vmatprep.subr.mxu0 0.0
        %855 = vmatpush1.xpose.msra.mxu0 0.0
        %856 = vmatprep.subr.mxu0 0.0
        %857 = vmatpush1.xpose.msra.mxu0 0.0
        %858 = vmatprep.subr.mxu0 0.0
        %859 = vmatpush1.xpose.msra.mxu0 0.0
        %860 = vmatprep.subr.mxu0 0.0
        %861 = vmatpush1.xpose.msra.mxu0 0.0
        %862 = vmatprep.subr.mxu0 0.0
        %863 = vmatpush1.xpose.msra.mxu0 0.0
        %864 = vmatprep.subr.mxu0 0.0
        %865 = vmatpush1.xpose.msra.mxu0 0.0
        %866 = vmatprep.subr.mxu0 0.0
        %867 = vmatpush1.xpose.msra.mxu0 0.0
        %868 = vmatprep.subr.mxu0 0.0
        %869 = vmatpush1.xpose.msra.mxu0 0.0
        %870 = vmatprep.subr.mxu0 0.0
        %871 = vmatpush1.xpose.msra.mxu0 0.0
        %872 = vmatprep.subr.mxu0 0.0
        %873 = vmatpush1.xpose.msra.mxu0 0.0
        %874 = vmatprep.subr.mxu0 0.0
        %875 = vmatpush1.xpose.msra.mxu0 0.0
        %876 = vmatprep.subr.mxu0 0.0
        %877 = vmatpush1.xpose.msra.mxu0 0.0
        %878 = vmatprep.subr.mxu0 0.0
        %879 = vmatpush1.xpose.msra.mxu0 0.0
        %880 = vmatprep.subr.mxu0 0.0
        %881 = vmatpush1.xpose.msra.mxu0 0.0
        %882 = vmatprep.subr.mxu0 0.0
        %883 = vmatpush1.xpose.msra.mxu0 0.0
        %884 = vmatprep.subr.mxu0 0.0
        %885 = vmatpush1.xpose.msra.mxu0 0.0
        %886 = vmatprep.subr.mxu0 0.0
        %887 = vmatpush1.xpose.msra.mxu0 0.0
        %888 = vmatprep.subr.mxu0 0.0
        %889 = vmatpush1.xpose.msra.mxu0 0.0
        %890 = vmatprep.subr.mxu0 0.0
        %891 = vmatpush1.xpose.msra.mxu0 0.0
        %892 = vmatprep.subr.mxu0 0.0
        %893 = vmatpush1.xpose.msra.mxu0 0.0
        %894 = vmatprep.subr.mxu0 0.0
        %895 = vmatpush1.xpose.msra.mxu0 0.0
        %896 = vmatprep.subr.mxu0 0.0
        %897 = vmatpush1.xpose.msra.mxu0 0.0
        %898 = vmatprep.subr.mxu0 0.0
        %899 = vmatpush1.xpose.msra.mxu0 0.0
        %900 = vmatprep.subr.mxu0 0.0
        %901 = vmatpush1.xpose.msra.mxu0 0.0
        %902 = vmatprep.subr.mxu0 0.0
        %903 = vmatpush1.xpose.msra.mxu0 0.0
        %904 = vmatprep.subr.mxu0 0.0
        %905 = vmatpush1.xpose.msra.mxu0 0.0
        %906 = vmatprep.subr.mxu0 0.0
        %907 = vmatpush1.xpose.msra.mxu0 0.0
        %908 = vmatprep.subr.mxu0 0.0
        %909 = vmatpush1.xpose.msra.mxu0 0.0
        %910 = vmatprep.subr.mxu0 0.0
        %911 = vmatpush1.xpose.msra.mxu0 0.0
        %912 = vmatprep.mubr.f32.mxu0 0.0
        %913 = vmatmul.mubr.f32.gmra.mrb[0].mxu0 %v840
        %v914 = vpop.f32.mrb[0].mxu0
        %v915 = vadd.f32 0.0, %v914
        %v916 = vpop.f32.mrb[0].mxu0
        %917 = vdwg.mxu0
        %v918 = vsel %vm656, %v915, -inf
        %vm919 = vcmask 122880
        %v920 = vsel %vm919, %v918, -inf
        %921 = vmax.xlane.f32.xlu0 %v920
        %v922 = vpop.xlane.xlu0 %921
        %v923 = vsub.f32 %v918, %v922
        %v924 = vmul.f32 %v923, 1.442695
        %v925 = vpow.pop %v924
        %v926 = vsel %vm919, %v925, 0.0
        %927 = vadd.xlane.f32.xlu0 %v926
        %v928 = vpop.xlane.xlu0 %927
        %v929 = vrcp.pop %v928
        %v930 = vmul.f32 %v925, %v929
        %v931 = vpack.c.bf16 %v930, %v930
        %vm933 = vcmask 130048
        %v935 = vsel %vm933, %v931, 0
        %937 = vmatprep.subr.bf16.mxu0 0
        %938 = vmatpush1.bf16.msra.mxu0 %v471
        %939 = vmatprep.subr.bf16.mxu0 0
        %940 = vmatpush1.bf16.msra.mxu0 0
        %941 = vmatprep.subr.bf16.mxu0 0
        %942 = vmatpush1.bf16.msra.mxu0 0
        %943 = vmatprep.subr.bf16.mxu0 0
        %944 = vmatpush1.bf16.msra.mxu0 0
        %945 = vmatprep.subr.bf16.mxu0 0
        %946 = vmatpush1.bf16.msra.mxu0 0
        %947 = vmatprep.subr.bf16.mxu0 0
        %948 = vmatpush1.bf16.msra.mxu0 0
        %949 = vmatprep.subr.bf16.mxu0 0
        %950 = vmatpush1.bf16.msra.mxu0 0
        %951 = vmatprep.subr.bf16.mxu0 0
        %952 = vmatpush1.bf16.msra.mxu0 0
        %953 = vmatprep.subr.bf16.mxu0 0
        %954 = vmatpush1.bf16.msra.mxu0 0
        %955 = vmatprep.subr.bf16.mxu0 0
        %956 = vmatpush1.bf16.msra.mxu0 0
        %957 = vmatprep.subr.bf16.mxu0 0
        %958 = vmatpush1.bf16.msra.mxu0 0
        %959 = vmatprep.subr.bf16.mxu0 0
        %960 = vmatpush1.bf16.msra.mxu0 0
        %961 = vmatprep.subr.bf16.mxu0 0
        %962 = vmatpush1.bf16.msra.mxu0 0
        %963 = vmatprep.subr.bf16.mxu0 0
        %964 = vmatpush1.bf16.msra.mxu0 0
        %965 = vmatprep.subr.bf16.mxu0 0
        %966 = vmatpush1.bf16.msra.mxu0 0
        %967 = vmatprep.subr.bf16.mxu0 0
        %968 = vmatpush1.bf16.msra.mxu0 0
        %969 = vmatprep.mubr.bf16.mxu0 0
        %970 = vmatmul.mubr.bf16.gmra.mrb[0].mxu0 %v935
        %v971 = vpop.f32.mrb[0].mxu0
        %v972 = vadd.f32 0.0, %v971
        %v973 = vpop.f32.mrb[0].mxu0
        %v974 = vpop.f32.mrb[0].mxu0
        %v975 = vpop.f32.mrb[0].mxu0
        %976 = vdwg.mxu0
        %s977 = sadd.s32 %s652, 1
        %s978 = sld [smem:[#allocation3 + %s977]]
        %s979 = scvt.s32.f32 %s978
        %v980 = vstv %s978
        %vm981 = vcmp.lt.s32.totalorder %v651, %v980
        %v982 = vsel %vm981, 1, 0
        %v983 = vcvt.s32.f32 %v982
        %v984 = vstv %s979
        %v985 = vrcp.pop %v984
        %s986 = vtos %v985
        %v987 = vstv %s986
        %v988 = vmul.f32 %v983, %v987
        %990 = vrot.lane.b32.xlu0 %v988, 3
        %v991 = vpop.permute.xlu0 %990
        %v993 = vsel %vm668, 0.0, %v991
        %v994 = vsel %vm670, %v993, 0.0
        %v996 = vrot.slane %v994, 7
        %997 = vrot.lane.b32.xlu0 %v996, 127
        %v998 = vpop.permute.xlu0 %997
        %v1000 = vrot.slane %v994, 6
        %1001 = vrot.lane.b32.xlu0 %v1000, 126
        %v1002 = vpop.permute.xlu0 %1001
        %v1004 = vrot.slane %v994, 5
        %1005 = vrot.lane.b32.xlu0 %v1004, 125
        %v1006 = vpop.permute.xlu0 %1005
        %v1008 = vrot.slane %v994, 4
        %1009 = vrot.lane.b32.xlu0 %v1008, 124
        %v1010 = vpop.permute.xlu0 %1009
        %v1012 = vrot.slane %v994, 3
        %1013 = vrot.lane.b32.xlu0 %v1012, 123
        %v1014 = vpop.permute.xlu0 %1013
        %v1016 = vrot.slane %v994, 2
        %1017 = vrot.lane.b32.xlu0 %v1016, 122
        %v1018 = vpop.permute.xlu0 %1017
        %v1020 = vsel %vm697, %v994, %v998
        %v1021 = vsel %vm699, %v1020, %v1002
        %v1022 = vsel %vm701, %v1021, %v1006
        %v1023 = vsel %vm703, %v1022, %v1010
        %v1024 = vsel %vm705, %v1023, %v1014
        %v1025 = vsel %vm707, %v1024, %v1018
        %1026 = vxpose.xlu0.b32.start [1/16] %v1025, 128
        %1027 = vxpose.xlu0.b32.cont [2/16] 0.0, 128
        %1028 = vxpose.xlu0.b32.cont [3/16] 0.0, 128
        %1029 = vxpose.xlu0.b32.cont [4/16] 0.0, 128
        %1030 = vxpose.xlu0.b32.cont [5/16] 0.0, 128
        %1031 = vxpose.xlu0.b32.cont [6/16] 0.0, 128
        %1032 = vxpose.xlu0.b32.cont [7/16] 0.0, 128
        %1033 = vxpose.xlu0.b32.cont [8/16] 0.0, 128
        %1034 = vxpose.xlu0.b32.cont [9/16] 0.0, 128
        %1035 = vxpose.xlu0.b32.cont [10/16] 0.0, 128
        %1036 = vxpose.xlu0.b32.cont [11/16] 0.0, 128
        %1037 = vxpose.xlu0.b32.cont [12/16] 0.0, 128
        %1038 = vxpose.xlu0.b32.cont [13/16] 0.0, 128
        %1039 = vxpose.xlu0.b32.cont [14/16] 0.0, 128
        %1040 = vxpose.xlu0.b32.cont [15/16] 0.0, 128
        %1041 = vxpose.xlu0.b32.end [16/16] 0.0, 128
        %v1042 = vpop.trf.xlu0
        %v1043 = vpop.trf.xlu0
        %v1044 = vpop.trf.xlu0
        %v1045 = vpop.trf.xlu0
        %v1046 = vpop.trf.xlu0
        %v1047 = vpop.trf.xlu0
        %v1048 = vpop.trf.xlu0
        %v1049 = vpop.trf.xlu0
        %v1050 = vpop.trf.xlu0
        %v1051 = vpop.trf.xlu0
        %v1052 = vpop.trf.xlu0
        %v1053 = vpop.trf.xlu0
        %v1054 = vpop.trf.xlu0
        %v1055 = vpop.trf.xlu0
        %v1056 = vpop.trf.xlu0
        %v1057 = vpop.trf.xlu0
        %v1059 = vsel %vm742, %v1042, 0
        %v1062 = vsel %vm742, %v1043, 0
        %1064 = vmatprep.subr.mxu0 0.0
        %1065 = vmatpush1.msra.mxu0 %v751
        %1066 = vmatprep.subr.mxu0 0.0
        %1067 = vmatpush1.msra.mxu0 0.0
        %1068 = vmatprep.subr.mxu0 0.0
        %1069 = vmatpush1.msra.mxu0 0.0
        %1070 = vmatprep.subr.mxu0 0.0
        %1071 = vmatpush1.msra.mxu0 0.0
        %1072 = vmatprep.subr.mxu0 0.0
        %1073 = vmatpush1.msra.mxu0 0.0
        %1074 = vmatprep.subr.mxu0 0.0
        %1075 = vmatpush1.msra.mxu0 0.0
        %1076 = vmatprep.subr.mxu0 0.0
        %1077 = vmatpush1.msra.mxu0 0.0
        %1078 = vmatprep.subr.mxu0 0.0
        %1079 = vmatpush1.msra.mxu0 0.0
        %1080 = vmatprep.subr.mxu0 0.0
        %1081 = vmatpush1.msra.mxu0 0.0
        %1082 = vmatprep.subr.mxu0 0.0
        %1083 = vmatpush1.msra.mxu0 0.0
        %1084 = vmatprep.subr.mxu0 0.0
        %1085 = vmatpush1.msra.mxu0 0.0
        %1086 = vmatprep.subr.mxu0 0.0
        %1087 = vmatpush1.msra.mxu0 0.0
        %1088 = vmatprep.subr.mxu0 0.0
        %1089 = vmatpush1.msra.mxu0 0.0
        %1090 = vmatprep.subr.mxu0 0.0
        %1091 = vmatpush1.msra.mxu0 0.0
        %1092 = vmatprep.subr.mxu0 0.0
        %1093 = vmatpush1.msra.mxu0 0.0
        %1094 = vmatprep.subr.mxu0 0.0
        %1095 = vmatpush1.msra.mxu0 0.0
        %1096 = vmatprep.subr.mxu0 0.0
        %1097 = vmatpush1.msra.mxu0 0.0
        %1098 = vmatprep.subr.mxu0 0.0
        %1099 = vmatpush1.msra.mxu0 0.0
        %1100 = vmatprep.subr.mxu0 0.0
        %1101 = vmatpush1.msra.mxu0 0.0
        %1102 = vmatprep.subr.mxu0 0.0
        %1103 = vmatpush1.msra.mxu0 0.0
        %1104 = vmatprep.subr.mxu0 0.0
        %1105 = vmatpush1.msra.mxu0 0.0
        %1106 = vmatprep.subr.mxu0 0.0
        %1107 = vmatpush1.msra.mxu0 0.0
        %1108 = vmatprep.subr.mxu0 0.0
        %1109 = vmatpush1.msra.mxu0 0.0
        %1110 = vmatprep.subr.mxu0 0.0
        %1111 = vmatpush1.msra.mxu0 0.0
        %1112 = vmatprep.subr.mxu0 0.0
        %1113 = vmatpush1.msra.mxu0 0.0
        %1114 = vmatprep.subr.mxu0 0.0
        %1115 = vmatpush1.msra.mxu0 0.0
        %1116 = vmatprep.subr.mxu0 0.0
        %1117 = vmatpush1.msra.mxu0 0.0
        %1118 = vmatprep.subr.mxu0 0.0
        %1119 = vmatpush1.msra.mxu0 0.0
        %1120 = vmatprep.subr.mxu0 0.0
        %1121 = vmatpush1.msra.mxu0 0.0
        %1122 = vmatprep.subr.mxu0 0.0
        %1123 = vmatpush1.msra.mxu0 0.0
        %1124 = vmatprep.subr.mxu0 0.0
        %1125 = vmatpush1.msra.mxu0 0.0
        %1126 = vmatprep.subr.mxu0 0.0
        %1127 = vmatpush1.msra.mxu0 0.0
        %1128 = vmatprep.mubr.f32.mxu0 0.0
        %1129 = vmatmul.mubr.f32.gmra.mrb[0].mxu0 %v1059
        %v1130 = vpop.f32.mrb[0].mxu0
        %v1131 = vadd.f32 0.0, %v1130
        %v1132 = vpop.f32.mrb[0].mxu0
        %1133 = vmatprep.mubr.f32.mxu0 0.0
        %1134 = vmatmul.mubr.f32.gmra.mrb[0].mxu0 %v1062
        %v1135 = vpop.f32.mrb[0].mxu0
        %v1136 = vadd.f32 0.0, %v1135
        %v1137 = vpop.f32.mrb[0].mxu0
        %1138 = vdwg.mxu0
        %v1139 = vlaneseq
        %v1140 = vshrl.u32 %v1139, 7
        %v1141 = vsub.s32 1, %v1140
        %v1142 = vrot.slane %v647, %v1141
        %v1143 = vadd.f32 %v543, %v1142
        %v1144 = vadd.f32 %v546, %v1142
        %v1145 = vadd.f32 %v1143, %v1131
        %v1146 = vadd.f32 %v1144, %v1136
        %v1147 = vtanh.pop %v1145
        %v1148 = vtanh.pop %v1146
        %v1150 = vsel %vm487, %v1147, 0
        %v1153 = vsel %vm487, %v1148, 0
        %1155 = vmatprep.subr.mxu0 0.0
        %1156 = vmatpush1.xpose.msra.mxu0 %v1150
        %1157 = vmatprep.subr.mxu0 0.0
        %1158 = vmatpush1.xpose.msra.mxu0 %v1153
        %1159 = vmatprep.subr.mxu0 0.0
        %1160 = vmatpush1.xpose.msra.mxu0 0.0
        %1161 = vmatprep.subr.mxu0 0.0
        %1162 = vmatpush1.xpose.msra.mxu0 0.0
        %1163 = vmatprep.subr.mxu0 0.0
        %1164 = vmatpush1.xpose.msra.mxu0 0.0
        %1165 = vmatprep.subr.mxu0 0.0
        %1166 = vmatpush1.xpose.msra.mxu0 0.0
        %1167 = vmatprep.subr.mxu0 0.0
        %1168 = vmatpush1.xpose.msra.mxu0 0.0
        %1169 = vmatprep.subr.mxu0 0.0
        %1170 = vmatpush1.xpose.msra.mxu0 0.0
        %1171 = vmatprep.subr.mxu0 0.0
        %1172 = vmatpush1.xpose.msra.mxu0 0.0
        %1173 = vmatprep.subr.mxu0 0.0
        %1174 = vmatpush1.xpose.msra.mxu0 0.0
        %1175 = vmatprep.subr.mxu0 0.0
        %1176 = vmatpush1.xpose.msra.mxu0 0.0
        %1177 = vmatprep.subr.mxu0 0.0
        %1178 = vmatpush1.xpose.msra.mxu0 0.0
        %1179 = vmatprep.subr.mxu0 0.0
        %1180 = vmatpush1.xpose.msra.mxu0 0.0
        %1181 = vmatprep.subr.mxu0 0.0
        %1182 = vmatpush1.xpose.msra.mxu0 0.0
        %1183 = vmatprep.subr.mxu0 0.0
        %1184 = vmatpush1.xpose.msra.mxu0 0.0
        %1185 = vmatprep.subr.mxu0 0.0
        %1186 = vmatpush1.xpose.msra.mxu0 0.0
        %1187 = vmatprep.subr.mxu0 0.0
        %1188 = vmatpush1.xpose.msra.mxu0 0.0
        %1189 = vmatprep.subr.mxu0 0.0
        %1190 = vmatpush1.xpose.msra.mxu0 0.0
        %1191 = vmatprep.subr.mxu0 0.0
        %1192 = vmatpush1.xpose.msra.mxu0 0.0
        %1193 = vmatprep.subr.mxu0 0.0
        %1194 = vmatpush1.xpose.msra.mxu0 0.0
        %1195 = vmatprep.subr.mxu0 0.0
        %1196 = vmatpush1.xpose.msra.mxu0 0.0
        %1197 = vmatprep.subr.mxu0 0.0
        %1198 = vmatpush1.xpose.msra.mxu0 0.0
        %1199 = vmatprep.subr.mxu0 0.0
        %1200 = vmatpush1.xpose.msra.mxu0 0.0
        %1201 = vmatprep.subr.mxu0 0.0
        %1202 = vmatpush1.xpose.msra.mxu0 0.0
        %1203 = vmatprep.subr.mxu0 0.0
        %1204 = vmatpush1.xpose.msra.mxu0 0.0
        %1205 = vmatprep.subr.mxu0 0.0
        %1206 = vmatpush1.xpose.msra.mxu0 0.0
        %1207 = vmatprep.subr.mxu0 0.0
        %1208 = vmatpush1.xpose.msra.mxu0 0.0
        %1209 = vmatprep.subr.mxu0 0.0
        %1210 = vmatpush1.xpose.msra.mxu0 0.0
        %1211 = vmatprep.subr.mxu0 0.0
        %1212 = vmatpush1.xpose.msra.mxu0 0.0
        %1213 = vmatprep.subr.mxu0 0.0
        %1214 = vmatpush1.xpose.msra.mxu0 0.0
        %1215 = vmatprep.subr.mxu0 0.0
        %1216 = vmatpush1.xpose.msra.mxu0 0.0
        %1217 = vmatprep.subr.mxu0 0.0
        %1218 = vmatpush1.xpose.msra.mxu0 0.0
        %1219 = vmatprep.mubr.f32.mxu0 0.0
        %1220 = vmatmul.mubr.f32.gmra.mrb[0].mxu0 %v840
        %v1221 = vpop.f32.mrb[0].mxu0
        %v1222 = vadd.f32 0.0, %v1221
        %v1223 = vpop.f32.mrb[0].mxu0
        %1224 = vdwg.mxu0
        %v1225 = vsel %vm981, %v1222, -inf
        %v1226 = vsel %vm919, %v1225, -inf
        %1227 = vmax.xlane.f32.xlu0 %v1226
        %v1228 = vpop.xlane.xlu0 %1227
        %v1229 = vsub.f32 %v1225, %v1228
        %v1230 = vmul.f32 %v1229, 1.442695
        %v1231 = vpow.pop %v1230
        %v1232 = vsel %vm919, %v1231, 0.0
        %1233 = vadd.xlane.f32.xlu0 %v1232
        %v1234 = vpop.xlane.xlu0 %1233
        %v1235 = vrcp.pop %v1234
        %v1236 = vmul.f32 %v1231, %v1235
        %v1237 = vpack.c.bf16 %v1236, %v1236
        %v1240 = vsel %vm933, %v1237, 0
        %1242 = vmatprep.subr.bf16.mxu0 0
        %1243 = vmatpush1.bf16.msra.mxu0 %v472
        %1244 = vmatprep.subr.bf16.mxu0 0
        %1245 = vmatpush1.bf16.msra.mxu0 0
        %1246 = vmatprep.subr.bf16.mxu0 0
        %1247 = vmatpush1.bf16.msra.mxu0 0
        %1248 = vmatprep.subr.bf16.mxu0 0
        %1249 = vmatpush1.bf16.msra.mxu0 0
        %1250 = vmatprep.subr.bf16.mxu0 0
        %1251 = vmatpush1.bf16.msra.mxu0 0
        %1252 = vmatprep.subr.bf16.mxu0 0
        %1253 = vmatpush1.bf16.msra.mxu0 0
        %1254 = vmatprep.subr.bf16.mxu0 0
        %1255 = vmatpush1.bf16.msra.mxu0 0
        %1256 = vmatprep.subr.bf16.mxu0 0
        %1257 = vmatpush1.bf16.msra.mxu0 0
        %1258 = vmatprep.subr.bf16.mxu0 0
        %1259 = vmatpush1.bf16.msra.mxu0 0
        %1260 = vmatprep.subr.bf16.mxu0 0
        %1261 = vmatpush1.bf16.msra.mxu0 0
        %1262 = vmatprep.subr.bf16.mxu0 0
        %1263 = vmatpush1.bf16.msra.mxu0 0
        %1264 = vmatprep.subr.bf16.mxu0 0
        %1265 = vmatpush1.bf16.msra.mxu0 0
        %1266 = vmatprep.subr.bf16.mxu0 0
        %1267 = vmatpush1.bf16.msra.mxu0 0
        %1268 = vmatprep.subr.bf16.mxu0 0
        %1269 = vmatpush1.bf16.msra.mxu0 0
        %1270 = vmatprep.subr.bf16.mxu0 0
        %1271 = vmatpush1.bf16.msra.mxu0 0
        %1272 = vmatprep.subr.bf16.mxu0 0
        %1273 = vmatpush1.bf16.msra.mxu0 0
        %1274 = vmatprep.mubr.bf16.mxu0 0
        %1275 = vmatmul.mubr.bf16.gmra.mrb[0].mxu0 %v1240
        %v1276 = vpop.f32.mrb[0].mxu0
        %v1277 = vadd.f32 0.0, %v1276
        %v1278 = vpop.f32.mrb[0].mxu0
        %v1279 = vpop.f32.mrb[0].mxu0
        %v1280 = vpop.f32.mrb[0].mxu0
        %1281 = vdwg.mxu0
        %s1282 = sadd.s32 %s652, 2
        %s1283 = sld [smem:[#allocation3 + %s1282]]
        %s1284 = scvt.s32.f32 %s1283
        %v1285 = vstv %s1283
        %vm1286 = vcmp.lt.s32.totalorder %v651, %v1285
        %v1287 = vsel %vm1286, 1, 0
        %v1288 = vcvt.s32.f32 %v1287
        %v1289 = vstv %s1284
        %v1290 = vrcp.pop %v1289
        %s1291 = vtos %v1290
        %v1292 = vstv %s1291
        %v1293 = vmul.f32 %v1288, %v1292
        %1295 = vrot.lane.b32.xlu0 %v1293, 3
        %v1296 = vpop.permute.xlu0 %1295
        %v1298 = vsel %vm668, 0.0, %v1296
        %v1299 = vsel %vm670, %v1298, 0.0
        %v1301 = vrot.slane %v1299, 7
        %1302 = vrot.lane.b32.xlu0 %v1301, 127
        %v1303 = vpop.permute.xlu0 %1302
        %v1305 = vrot.slane %v1299, 6
        %1306 = vrot.lane.b32.xlu0 %v1305, 126
        %v1307 = vpop.permute.xlu0 %1306
        %v1309 = vrot.slane %v1299, 5
        %1310 = vrot.lane.b32.xlu0 %v1309, 125
        %v1311 = vpop.permute.xlu0 %1310
        %v1313 = vrot.slane %v1299, 4
        %1314 = vrot.lane.b32.xlu0 %v1313, 124
        %v1315 = vpop.permute.xlu0 %1314
        %v1317 = vrot.slane %v1299, 3
        %1318 = vrot.lane.b32.xlu0 %v1317, 123
        %v1319 = vpop.permute.xlu0 %1318
        %v1321 = vrot.slane %v1299, 2
        %1322 = vrot.lane.b32.xlu0 %v1321, 122
        %v1323 = vpop.permute.xlu0 %1322
        %v1325 = vsel %vm697, %v1299, %v1303
        %v1326 = vsel %vm699, %v1325, %v1307
        %v1327 = vsel %vm701, %v1326, %v1311
        %v1328 = vsel %vm703, %v1327, %v1315
        %v1329 = vsel %vm705, %v1328, %v1319
        %v1330 = vsel %vm707, %v1329, %v1323
        %1331 = vxpose.xlu0.b32.start [1/16] %v1330, 128
        %1332 = vxpose.xlu0.b32.cont [2/16] 0.0, 128
        %1333 = vxpose.xlu0.b32.cont [3/16] 0.0, 128
        %1334 = vxpose.xlu0.b32.cont [4/16] 0.0, 128
        %1335 = vxpose.xlu0.b32.cont [5/16] 0.0, 128
        %1336 = vxpose.xlu0.b32.cont [6/16] 0.0, 128
        %1337 = vxpose.xlu0.b32.cont [7/16] 0.0, 128
        %1338 = vxpose.xlu0.b32.cont [8/16] 0.0, 128
        %1339 = vxpose.xlu0.b32.cont [9/16] 0.0, 128
        %1340 = vxpose.xlu0.b32.cont [10/16] 0.0, 128
        %1341 = vxpose.xlu0.b32.cont [11/16] 0.0, 128
        %1342 = vxpose.xlu0.b32.cont [12/16] 0.0, 128
        %1343 = vxpose.xlu0.b32.cont [13/16] 0.0, 128
        %1344 = vxpose.xlu0.b32.cont [14/16] 0.0, 128
        %1345 = vxpose.xlu0.b32.cont [15/16] 0.0, 128
        %1346 = vxpose.xlu0.b32.end [16/16] 0.0, 128
        %v1347 = vpop.trf.xlu0
        %v1348 = vpop.trf.xlu0
        %v1349 = vpop.trf.xlu0
        %v1350 = vpop.trf.xlu0
        %v1351 = vpop.trf.xlu0
        %v1352 = vpop.trf.xlu0
        %v1353 = vpop.trf.xlu0
        %v1354 = vpop.trf.xlu0
        %v1355 = vpop.trf.xlu0
        %v1356 = vpop.trf.xlu0
        %v1357 = vpop.trf.xlu0
        %v1358 = vpop.trf.xlu0
        %v1359 = vpop.trf.xlu0
        %v1360 = vpop.trf.xlu0
        %v1361 = vpop.trf.xlu0
        %v1362 = vpop.trf.xlu0
        %v1364 = vsel %vm742, %v1347, 0
        %v1367 = vsel %vm742, %v1348, 0
        %1369 = vmatprep.subr.mxu0 0.0
        %1370 = vmatpush1.msra.mxu0 %v751
        %1371 = vmatprep.subr.mxu0 0.0
        %1372 = vmatpush1.msra.mxu0 0.0
        %1373 = vmatprep.subr.mxu0 0.0
        %1374 = vmatpush1.msra.mxu0 0.0
        %1375 = vmatprep.subr.mxu0 0.0
        %1376 = vmatpush1.msra.mxu0 0.0
        %1377 = vmatprep.subr.mxu0 0.0
        %1378 = vmatpush1.msra.mxu0 0.0
        %1379 = vmatprep.subr.mxu0 0.0
        %1380 = vmatpush1.msra.mxu0 0.0
        %1381 = vmatprep.subr.mxu0 0.0
        %1382 = vmatpush1.msra.mxu0 0.0
        %1383 = vmatprep.subr.mxu0 0.0
        %1384 = vmatpush1.msra.mxu0 0.0
        %1385 = vmatprep.subr.mxu0 0.0
        %1386 = vmatpush1.msra.mxu0 0.0
        %1387 = vmatprep.subr.mxu0 0.0
        %1388 = vmatpush1.msra.mxu0 0.0
        %1389 = vmatprep.subr.mxu0 0.0
        %1390 = vmatpush1.msra.mxu0 0.0
        %1391 = vmatprep.subr.mxu0 0.0
        %1392 = vmatpush1.msra.mxu0 0.0
        %1393 = vmatprep.subr.mxu0 0.0
        %1394 = vmatpush1.msra.mxu0 0.0
        %1395 = vmatprep.subr.mxu0 0.0
        %1396 = vmatpush1.msra.mxu0 0.0
        %1397 = vmatprep.subr.mxu0 0.0
        %1398 = vmatpush1.msra.mxu0 0.0
        %1399 = vmatprep.subr.mxu0 0.0
        %1400 = vmatpush1.msra.mxu0 0.0
        %1401 = vmatprep.subr.mxu0 0.0
        %1402 = vmatpush1.msra.mxu0 0.0
        %1403 = vmatprep.subr.mxu0 0.0
        %1404 = vmatpush1.msra.mxu0 0.0
        %1405 = vmatprep.subr.mxu0 0.0
        %1406 = vmatpush1.msra.mxu0 0.0
        %1407 = vmatprep.subr.mxu0 0.0
        %1408 = vmatpush1.msra.mxu0 0.0
        %1409 = vmatprep.subr.mxu0 0.0
        %1410 = vmatpush1.msra.mxu0 0.0
        %1411 = vmatprep.subr.mxu0 0.0
        %1412 = vmatpush1.msra.mxu0 0.0
        %1413 = vmatprep.subr.mxu0 0.0
        %1414 = vmatpush1.msra.mxu0 0.0
        %1415 = vmatprep.subr.mxu0 0.0
        %1416 = vmatpush1.msra.mxu0 0.0
        %1417 = vmatprep.subr.mxu0 0.0
        %1418 = vmatpush1.msra.mxu0 0.0
        %1419 = vmatprep.subr.mxu0 0.0
        %1420 = vmatpush1.msra.mxu0 0.0
        %1421 = vmatprep.subr.mxu0 0.0
        %1422 = vmatpush1.msra.mxu0 0.0
        %1423 = vmatprep.subr.mxu0 0.0
        %1424 = vmatpush1.msra.mxu0 0.0
        %1425 = vmatprep.subr.mxu0 0.0
        %1426 = vmatpush1.msra.mxu0 0.0
        %1427 = vmatprep.subr.mxu0 0.0
        %1428 = vmatpush1.msra.mxu0 0.0
        %1429 = vmatprep.subr.mxu0 0.0
        %1430 = vmatpush1.msra.mxu0 0.0
        %1431 = vmatprep.subr.mxu0 0.0
        %1432 = vmatpush1.msra.mxu0 0.0
        %1433 = vmatprep.mubr.f32.mxu0 0.0
        %1434 = vmatmul.mubr.f32.gmra.mrb[0].mxu0 %v1364
        %v1435 = vpop.f32.mrb[0].mxu0
        %v1436 = vadd.f32 0.0, %v1435
        %v1437 = vpop.f32.mrb[0].mxu0
        %1438 = vmatprep.mubr.f32.mxu0 0.0
        %1439 = vmatmul.mubr.f32.gmra.mrb[0].mxu0 %v1367
        %v1440 = vpop.f32.mrb[0].mxu0
        %v1441 = vadd.f32 0.0, %v1440
        %v1442 = vpop.f32.mrb[0].mxu0
        %1443 = vdwg.mxu0
        %v1444 = vlaneseq
        %v1445 = vshrl.u32 %v1444, 7
        %v1446 = vsub.s32 2, %v1445
        %v1447 = vrot.slane %v647, %v1446
        %v1448 = vadd.f32 %v551, %v1447
        %v1449 = vadd.f32 %v554, %v1447
        %v1450 = vadd.f32 %v1448, %v1436
        %v1451 = vadd.f32 %v1449, %v1441
        %v1452 = vtanh.pop %v1450
        %v1453 = vtanh.pop %v1451
        %v1455 = vsel %vm487, %v1452, 0
        %v1458 = vsel %vm487, %v1453, 0
        %1460 = vmatprep.subr.mxu0 0.0
        %1461 = vmatpush1.xpose.msra.mxu0 %v1455
        %1462 = vmatprep.subr.mxu0 0.0
        %1463 = vmatpush1.xpose.msra.mxu0 %v1458
        %1464 = vmatprep.subr.mxu0 0.0
        %1465 = vmatpush1.xpose.msra.mxu0 0.0
        %1466 = vmatprep.subr.mxu0 0.0
        %1467 = vmatpush1.xpose.msra.mxu0 0.0
        %1468 = vmatprep.subr.mxu0 0.0
        %1469 = vmatpush1.xpose.msra.mxu0 0.0
        %1470 = vmatprep.subr.mxu0 0.0
        %1471 = vmatpush1.xpose.msra.mxu0 0.0
        %1472 = vmatprep.subr.mxu0 0.0
        %1473 = vmatpush1.xpose.msra.mxu0 0.0
        %1474 = vmatprep.subr.mxu0 0.0
        %1475 = vmatpush1.xpose.msra.mxu0 0.0
        %1476 = vmatprep.subr.mxu0 0.0
        %1477 = vmatpush1.xpose.msra.mxu0 0.0
        %1478 = vmatprep.subr.mxu0 0.0
        %1479 = vmatpush1.xpose.msra.mxu0 0.0
        %1480 = vmatprep.subr.mxu0 0.0
        %1481 = vmatpush1.xpose.msra.mxu0 0.0
        %1482 = vmatprep.subr.mxu0 0.0
        %1483 = vmatpush1.xpose.msra.mxu0 0.0
        %1484 = vmatprep.subr.mxu0 0.0
        %1485 = vmatpush1.xpose.msra.mxu0 0.0
        %1486 = vmatprep.subr.mxu0 0.0
        %1487 = vmatpush1.xpose.msra.mxu0 0.0
        %1488 = vmatprep.subr.mxu0 0.0
        %1489 = vmatpush1.xpose.msra.mxu0 0.0
        %1490 = vmatprep.subr.mxu0 0.0
        %1491 = vmatpush1.xpose.msra.mxu0 0.0
        %1492 = vmatprep.subr.mxu0 0.0
        %1493 = vmatpush1.xpose.msra.mxu0 0.0
        %1494 = vmatprep.subr.mxu0 0.0
        %1495 = vmatpush1.xpose.msra.mxu0 0.0
        %1496 = vmatprep.subr.mxu0 0.0
        %1497 = vmatpush1.xpose.msra.mxu0 0.0
        %1498 = vmatprep.subr.mxu0 0.0
        %1499 = vmatpush1.xpose.msra.mxu0 0.0
        %1500 = vmatprep.subr.mxu0 0.0
        %1501 = vmatpush1.xpose.msra.mxu0 0.0
        %1502 = vmatprep.subr.mxu0 0.0
        %1503 = vmatpush1.xpose.msra.mxu0 0.0
        %1504 = vmatprep.subr.mxu0 0.0
        %1505 = vmatpush1.xpose.msra.mxu0 0.0
        %1506 = vmatprep.subr.mxu0 0.0
        %1507 = vmatpush1.xpose.msra.mxu0 0.0
        %1508 = vmatprep.subr.mxu0 0.0
        %1509 = vmatpush1.xpose.msra.mxu0 0.0
        %1510 = vmatprep.subr.mxu0 0.0
        %1511 = vmatpush1.xpose.msra.mxu0 0.0
        %1512 = vmatprep.subr.mxu0 0.0
        %1513 = vmatpush1.xpose.msra.mxu0 0.0
        %1514 = vmatprep.subr.mxu0 0.0
        %1515 = vmatpush1.xpose.msra.mxu0 0.0
        %1516 = vmatprep.subr.mxu0 0.0
        %1517 = vmatpush1.xpose.msra.mxu0 0.0
        %1518 = vmatprep.subr.mxu0 0.0
        %1519 = vmatpush1.xpose.msra.mxu0 0.0
        %1520 = vmatprep.subr.mxu0 0.0
        %1521 = vmatpush1.xpose.msra.mxu0 0.0
        %1522 = vmatprep.subr.mxu0 0.0
        %1523 = vmatpush1.xpose.msra.mxu0 0.0
        %1524 = vmatprep.mubr.f32.mxu0 0.0
        %1525 = vmatmul.mubr.f32.gmra.mrb[0].mxu0 %v840
        %v1526 = vpop.f32.mrb[0].mxu0
        %v1527 = vadd.f32 0.0, %v1526
        %v1528 = vpop.f32.mrb[0].mxu0
        %1529 = vdwg.mxu0
        %v1530 = vsel %vm1286, %v1527, -inf
        %v1531 = vsel %vm919, %v1530, -inf
        %1532 = vmax.xlane.f32.xlu0 %v1531
        %v1533 = vpop.xlane.xlu0 %1532
        %v1534 = vsub.f32 %v1530, %v1533
        %v1535 = vmul.f32 %v1534, 1.442695
        %v1536 = vpow.pop %v1535
        %v1537 = vsel %vm919, %v1536, 0.0
        %1538 = vadd.xlane.f32.xlu0 %v1537
        %v1539 = vpop.xlane.xlu0 %1538
        %v1540 = vrcp.pop %v1539
        %v1541 = vmul.f32 %v1536, %v1540
        %v1542 = vpack.c.bf16 %v1541, %v1541
        %v1545 = vsel %vm933, %v1542, 0
        %1547 = vmatprep.subr.bf16.mxu0 0
        %1548 = vmatpush1.bf16.msra.mxu0 %v473
        %1549 = vmatprep.subr.bf16.mxu0 0
        %1550 = vmatpush1.bf16.msra.mxu0 0
        %1551 = vmatprep.subr.bf16.mxu0 0
        %1552 = vmatpush1.bf16.msra.mxu0 0
        %1553 = vmatprep.subr.bf16.mxu0 0
        %1554 = vmatpush1.bf16.msra.mxu0 0
        %1555 = vmatprep.subr.bf16.mxu0 0
        %1556 = vmatpush1.bf16.msra.mxu0 0
        %1557 = vmatprep.subr.bf16.mxu0 0
        %1558 = vmatpush1.bf16.msra.mxu0 0
        %1559 = vmatprep.subr.bf16.mxu0 0
        %1560 = vmatpush1.bf16.msra.mxu0 0
        %1561 = vmatprep.subr.bf16.mxu0 0
        %1562 = vmatpush1.bf16.msra.mxu0 0
        %1563 = vmatprep.subr.bf16.mxu0 0
        %1564 = vmatpush1.bf16.msra.mxu0 0
        %1565 = vmatprep.subr.bf16.mxu0 0
        %1566 = vmatpush1.bf16.msra.mxu0 0
        %1567 = vmatprep.subr.bf16.mxu0 0
        %1568 = vmatpush1.bf16.msra.mxu0 0
        %1569 = vmatprep.subr.bf16.mxu0 0
        %1570 = vmatpush1.bf16.msra.mxu0 0
        %1571 = vmatprep.subr.bf16.mxu0 0
        %1572 = vmatpush1.bf16.msra.mxu0 0
        %1573 = vmatprep.subr.bf16.mxu0 0
        %1574 = vmatpush1.bf16.msra.mxu0 0
        %1575 = vmatprep.subr.bf16.mxu0 0
        %1576 = vmatpush1.bf16.msra.mxu0 0
        %1577 = vmatprep.subr.bf16.mxu0 0
        %1578 = vmatpush1.bf16.msra.mxu0 0
        %1579 = vmatprep.mubr.bf16.mxu0 0
        %1580 = vmatmul.mubr.bf16.gmra.mrb[0].mxu0 %v1545
        %v1581 = vpop.f32.mrb[0].mxu0
        %v1582 = vadd.f32 0.0, %v1581
        %v1583 = vpop.f32.mrb[0].mxu0
        %v1584 = vpop.f32.mrb[0].mxu0
        %v1585 = vpop.f32.mrb[0].mxu0
        %1586 = vdwg.mxu0
        %s1587 = sadd.s32 %s652, 3
        %s1588 = sld [smem:[#allocation3 + %s1587]]
        %s1589 = scvt.s32.f32 %s1588
        %v1590 = vstv %s1588
        %vm1591 = vcmp.lt.s32.totalorder %v651, %v1590
        %v1592 = vsel %vm1591, 1, 0
        %v1593 = vcvt.s32.f32 %v1592
        %v1594 = vstv %s1589
        %v1595 = vrcp.pop %v1594
        %s1596 = vtos %v1595
        %v1597 = vstv %s1596
        %v1598 = vmul.f32 %v1593, %v1597
        %1600 = vrot.lane.b32.xlu0 %v1598, 3
        %v1601 = vpop.permute.xlu0 %1600
        %v1603 = vsel %vm668, 0.0, %v1601
        %v1604 = vsel %vm670, %v1603, 0.0
        %v1606 = vrot.slane %v1604, 7
        %1607 = vrot.lane.b32.xlu0 %v1606, 127
        %v1608 = vpop.permute.xlu0 %1607
        %v1610 = vrot.slane %v1604, 6
        %1611 = vrot.lane.b32.xlu0 %v1610, 126
        %v1612 = vpop.permute.xlu0 %1611
        %v1614 = vrot.slane %v1604, 5
        %1615 = vrot.lane.b32.xlu0 %v1614, 125
        %v1616 = vpop.permute.xlu0 %1615
        %v1618 = vrot.slane %v1604, 4
        %1619 = vrot.lane.b32.xlu0 %v1618, 124
        %v1620 = vpop.permute.xlu0 %1619
        %v1622 = vrot.slane %v1604, 3
        %1623 = vrot.lane.b32.xlu0 %v1622, 123
        %v1624 = vpop.permute.xlu0 %1623
        %v1626 = vrot.slane %v1604, 2
        %1627 = vrot.lane.b32.xlu0 %v1626, 122
        %v1628 = vpop.permute.xlu0 %1627
        %v1630 = vsel %vm697, %v1604, %v1608
        %v1631 = vsel %vm699, %v1630, %v1612
        %v1632 = vsel %vm701, %v1631, %v1616
        %v1633 = vsel %vm703, %v1632, %v1620
        %v1634 = vsel %vm705, %v1633, %v1624
        %v1635 = vsel %vm707, %v1634, %v1628
        %1636 = vxpose.xlu0.b32.start [1/16] %v1635, 128
        %1637 = vxpose.xlu0.b32.cont [2/16] 0.0, 128
        %1638 = vxpose.xlu0.b32.cont [3/16] 0.0, 128
        %1639 = vxpose.xlu0.b32.cont [4/16] 0.0, 128
        %1640 = vxpose.xlu0.b32.cont [5/16] 0.0, 128
        %1641 = vxpose.xlu0.b32.cont [6/16] 0.0, 128
        %1642 = vxpose.xlu0.b32.cont [7/16] 0.0, 128
        %1643 = vxpose.xlu0.b32.cont [8/16] 0.0, 128
        %1644 = vxpose.xlu0.b32.cont [9/16] 0.0, 128
        %1645 = vxpose.xlu0.b32.cont [10/16] 0.0, 128
        %1646 = vxpose.xlu0.b32.cont [11/16] 0.0, 128
        %1647 = vxpose.xlu0.b32.cont [12/16] 0.0, 128
        %1648 = vxpose.xlu0.b32.cont [13/16] 0.0, 128
        %1649 = vxpose.xlu0.b32.cont [14/16] 0.0, 128
        %1650 = vxpose.xlu0.b32.cont [15/16] 0.0, 128
        %1651 = vxpose.xlu0.b32.end [16/16] 0.0, 128
        %v1652 = vpop.trf.xlu0
        %v1653 = vpop.trf.xlu0
        %v1654 = vpop.trf.xlu0
        %v1655 = vpop.trf.xlu0
        %v1656 = vpop.trf.xlu0
        %v1657 = vpop.trf.xlu0
        %v1658 = vpop.trf.xlu0
        %v1659 = vpop.trf.xlu0
        %v1660 = vpop.trf.xlu0
        %v1661 = vpop.trf.xlu0
        %v1662 = vpop.trf.xlu0
        %v1663 = vpop.trf.xlu0
        %v1664 = vpop.trf.xlu0
        %v1665 = vpop.trf.xlu0
        %v1666 = vpop.trf.xlu0
        %v1667 = vpop.trf.xlu0
        %v1669 = vsel %vm742, %v1652, 0
        %v1672 = vsel %vm742, %v1653, 0
        %1674 = vmatprep.subr.mxu0 0.0
        %1675 = vmatpush1.msra.mxu0 %v751
        %1676 = vmatprep.subr.mxu0 0.0
        %1677 = vmatpush1.msra.mxu0 0.0
        %1678 = vmatprep.subr.mxu0 0.0
        %1679 = vmatpush1.msra.mxu0 0.0
        %1680 = vmatprep.subr.mxu0 0.0
        %1681 = vmatpush1.msra.mxu0 0.0
        %1682 = vmatprep.subr.mxu0 0.0
        %1683 = vmatpush1.msra.mxu0 0.0
        %1684 = vmatprep.subr.mxu0 0.0
        %1685 = vmatpush1.msra.mxu0 0.0
        %1686 = vmatprep.subr.mxu0 0.0
        %1687 = vmatpush1.msra.mxu0 0.0
        %1688 = vmatprep.subr.mxu0 0.0
        %1689 = vmatpush1.msra.mxu0 0.0
        %1690 = vmatprep.subr.mxu0 0.0
        %1691 = vmatpush1.msra.mxu0 0.0
        %1692 = vmatprep.subr.mxu0 0.0
        %1693 = vmatpush1.msra.mxu0 0.0
        %1694 = vmatprep.subr.mxu0 0.0
        %1695 = vmatpush1.msra.mxu0 0.0
        %1696 = vmatprep.subr.mxu0 0.0
        %1697 = vmatpush1.msra.mxu0 0.0
        %1698 = vmatprep.subr.mxu0 0.0
        %1699 = vmatpush1.msra.mxu0 0.0
        %1700 = vmatprep.subr.mxu0 0.0
        %1701 = vmatpush1.msra.mxu0 0.0
        %1702 = vmatprep.subr.mxu0 0.0
        %1703 = vmatpush1.msra.mxu0 0.0
        %1704 = vmatprep.subr.mxu0 0.0
        %1705 = vmatpush1.msra.mxu0 0.0
        %1706 = vmatprep.subr.mxu0 0.0
        %1707 = vmatpush1.msra.mxu0 0.0
        %1708 = vmatprep.subr.mxu0 0.0
        %1709 = vmatpush1.msra.mxu0 0.0
        %1710 = vmatprep.subr.mxu0 0.0
        %1711 = vmatpush1.msra.mxu0 0.0
        %1712 = vmatprep.subr.mxu0 0.0
        %1713 = vmatpush1.msra.mxu0 0.0
        %1714 = vmatprep.subr.mxu0 0.0
        %1715 = vmatpush1.msra.mxu0 0.0
        %1716 = vmatprep.subr.mxu0 0.0
        %1717 = vmatpush1.msra.mxu0 0.0
        %1718 = vmatprep.subr.mxu0 0.0
        %1719 = vmatpush1.msra.mxu0 0.0
        %1720 = vmatprep.subr.mxu0 0.0
        %1721 = vmatpush1.msra.mxu0 0.0
        %1722 = vmatprep.subr.mxu0 0.0
        %1723 = vmatpush1.msra.mxu0 0.0
        %1724 = vmatprep.subr.mxu0 0.0
        %1725 = vmatpush1.msra.mxu0 0.0
        %1726 = vmatprep.subr.mxu0 0.0
        %1727 = vmatpush1.msra.mxu0 0.0
        %1728 = vmatprep.subr.mxu0 0.0
        %1729 = vmatpush1.msra.mxu0 0.0
        %1730 = vmatprep.subr.mxu0 0.0
        %1731 = vmatpush1.msra.mxu0 0.0
        %1732 = vmatprep.subr.mxu0 0.0
        %1733 = vmatpush1.msra.mxu0 0.0
        %1734 = vmatprep.subr.mxu0 0.0
        %1735 = vmatpush1.msra.mxu0 0.0
        %1736 = vmatprep.subr.mxu0 0.0
        %1737 = vmatpush1.msra.mxu0 0.0
        %1738 = vmatprep.mubr.f32.mxu0 0.0
        %1739 = vmatmul.mubr.f32.gmra.mrb[0].mxu0 %v1669
        %v1740 = vpop.f32.mrb[0].mxu0
        %v1741 = vadd.f32 0.0, %v1740
        %v1742 = vpop.f32.mrb[0].mxu0
        %1743 = vmatprep.mubr.f32.mxu0 0.0
        %1744 = vmatmul.mubr.f32.gmra.mrb[0].mxu0 %v1672
        %v1745 = vpop.f32.mrb[0].mxu0
        %v1746 = vadd.f32 0.0, %v1745
        %v1747 = vpop.f32.mrb[0].mxu0
        %1748 = vdwg.mxu0
        %v1749 = vlaneseq
        %v1750 = vshrl.u32 %v1749, 7
        %v1751 = vsub.s32 3, %v1750
        %v1752 = vrot.slane %v647, %v1751
        %v1753 = vadd.f32 %v559, %v1752
        %v1754 = vadd.f32 %v562, %v1752
        %v1755 = vadd.f32 %v1753, %v1741
        %v1756 = vadd.f32 %v1754, %v1746
        %v1757 = vtanh.pop %v1755
        %v1758 = vtanh.pop %v1756
        %v1760 = vsel %vm487, %v1757, 0
        %v1763 = vsel %vm487, %v1758, 0
        %1765 = vmatprep.subr.mxu0 0.0
        %1766 = vmatpush1.xpose.msra.mxu0 %v1760
        %1767 = vmatprep.subr.mxu0 0.0
        %1768 = vmatpush1.xpose.msra.mxu0 %v1763
        %1769 = vmatprep.subr.mxu0 0.0
        %1770 = vmatpush1.xpose.msra.mxu0 0.0
        %1771 = vmatprep.subr.mxu0 0.0
        %1772 = vmatpush1.xpose.msra.mxu0 0.0
        %1773 = vmatprep.subr.mxu0 0.0
        %1774 = vmatpush1.xpose.msra.mxu0 0.0
        %1775 = vmatprep.subr.mxu0 0.0
        %1776 = vmatpush1.xpose.msra.mxu0 0.0
        %1777 = vmatprep.subr.mxu0 0.0
        %1778 = vmatpush1.xpose.msra.mxu0 0.0
        %1779 = vmatprep.subr.mxu0 0.0
        %1780 = vmatpush1.xpose.msra.mxu0 0.0
        %1781 = vmatprep.subr.mxu0 0.0
        %1782 = vmatpush1.xpose.msra.mxu0 0.0
        %1783 = vmatprep.subr.mxu0 0.0
        %1784 = vmatpush1.xpose.msra.mxu0 0.0
        %1785 = vmatprep.subr.mxu0 0.0
        %1786 = vmatpush1.xpose.msra.mxu0 0.0
        %1787 = vmatprep.subr.mxu0 0.0
        %1788 = vmatpush1.xpose.msra.mxu0 0.0
        %1789 = vmatprep.subr.mxu0 0.0
        %1790 = vmatpush1.xpose.msra.mxu0 0.0
        %1791 = vmatprep.subr.mxu0 0.0
        %1792 = vmatpush1.xpose.msra.mxu0 0.0
        %1793 = vmatprep.subr.mxu0 0.0
        %1794 = vmatpush1.xpose.msra.mxu0 0.0
        %1795 = vmatprep.subr.mxu0 0.0
        %1796 = vmatpush1.xpose.msra.mxu0 0.0
        %1797 = vmatprep.subr.mxu0 0.0
        %1798 = vmatpush1.xpose.msra.mxu0 0.0
        %1799 = vmatprep.subr.mxu0 0.0
        %1800 = vmatpush1.xpose.msra.mxu0 0.0
        %1801 = vmatprep.subr.mxu0 0.0
        %1802 = vmatpush1.xpose.msra.mxu0 0.0
        %1803 = vmatprep.subr.mxu0 0.0
        %1804 = vmatpush1.xpose.msra.mxu0 0.0
        %1805 = vmatprep.subr.mxu0 0.0
        %1806 = vmatpush1.xpose.msra.mxu0 0.0
        %1807 = vmatprep.subr.mxu0 0.0
        %1808 = vmatpush1.xpose.msra.mxu0 0.0
        %1809 = vmatprep.subr.mxu0 0.0
        %1810 = vmatpush1.xpose.msra.mxu0 0.0
        %1811 = vmatprep.subr.mxu0 0.0
        %1812 = vmatpush1.xpose.msra.mxu0 0.0
        %1813 = vmatprep.subr.mxu0 0.0
        %1814 = vmatpush1.xpose.msra.mxu0 0.0
        %1815 = vmatprep.subr.mxu0 0.0
        %1816 = vmatpush1.xpose.msra.mxu0 0.0
        %1817 = vmatprep.subr.mxu0 0.0
        %1818 = vmatpush1.xpose.msra.mxu0 0.0
        %1819 = vmatprep.subr.mxu0 0.0
        %1820 = vmatpush1.xpose.msra.mxu0 0.0
        %1821 = vmatprep.subr.mxu0 0.0
        %1822 = vmatpush1.xpose.msra.mxu0 0.0
        %1823 = vmatprep.subr.mxu0 0.0
        %1824 = vmatpush1.xpose.msra.mxu0 0.0
        %1825 = vmatprep.subr.mxu0 0.0
        %1826 = vmatpush1.xpose.msra.mxu0 0.0
        %1827 = vmatprep.subr.mxu0 0.0
        %1828 = vmatpush1.xpose.msra.mxu0 0.0
        %1829 = vmatprep.mubr.f32.mxu0 0.0
        %1830 = vmatmul.mubr.f32.gmra.mrb[0].mxu0 %v840
        %v1831 = vpop.f32.mrb[0].mxu0
        %v1832 = vadd.f32 0.0, %v1831
        %v1833 = vpop.f32.mrb[0].mxu0
        %1834 = vdwg.mxu0
        %v1835 = vsel %vm1591, %v1832, -inf
        %v1836 = vsel %vm919, %v1835, -inf
        %1837 = vmax.xlane.f32.xlu0 %v1836
        %v1838 = vpop.xlane.xlu0 %1837
        %v1839 = vsub.f32 %v1835, %v1838
        %v1840 = vmul.f32 %v1839, 1.442695
        %v1841 = vpow.pop %v1840
        %v1842 = vsel %vm919, %v1841, 0.0
        %1843 = vadd.xlane.f32.xlu0 %v1842
        %v1844 = vpop.xlane.xlu0 %1843
        %v1845 = vrcp.pop %v1844
        %v1846 = vmul.f32 %v1841, %v1845
        %v1847 = vpack.c.bf16 %v1846, %v1846
        %v1850 = vsel %vm933, %v1847, 0
        %1852 = vmatprep.subr.bf16.mxu0 0
        %1853 = vmatpush1.bf16.msra.mxu0 %v474
        %1854 = vmatprep.subr.bf16.mxu0 0
        %1855 = vmatpush1.bf16.msra.mxu0 0
        %1856 = vmatprep.subr.bf16.mxu0 0
        %1857 = vmatpush1.bf16.msra.mxu0 0
        %1858 = vmatprep.subr.bf16.mxu0 0
        %1859 = vmatpush1.bf16.msra.mxu0 0
        %1860 = vmatprep.subr.bf16.mxu0 0
        %1861 = vmatpush1.bf16.msra.mxu0 0
        %1862 = vmatprep.subr.bf16.mxu0 0
        %1863 = vmatpush1.bf16.msra.mxu0 0
        %1864 = vmatprep.subr.bf16.mxu0 0
        %1865 = vmatpush1.bf16.msra.mxu0 0
        %1866 = vmatprep.subr.bf16.mxu0 0
        %1867 = vmatpush1.bf16.msra.mxu0 0
        %1868 = vmatprep.subr.bf16.mxu0 0
        %1869 = vmatpush1.bf16.msra.mxu0 0
        %1870 = vmatprep.subr.bf16.mxu0 0
        %1871 = vmatpush1.bf16.msra.mxu0 0
        %1872 = vmatprep.subr.bf16.mxu0 0
        %1873 = vmatpush1.bf16.msra.mxu0 0
        %1874 = vmatprep.subr.bf16.mxu0 0
        %1875 = vmatpush1.bf16.msra.mxu0 0
        %1876 = vmatprep.subr.bf16.mxu0 0
        %1877 = vmatpush1.bf16.msra.mxu0 0
        %1878 = vmatprep.subr.bf16.mxu0 0
        %1879 = vmatpush1.bf16.msra.mxu0 0
        %1880 = vmatprep.subr.bf16.mxu0 0
        %1881 = vmatpush1.bf16.msra.mxu0 0
        %1882 = vmatprep.subr.bf16.mxu0 0
        %1883 = vmatpush1.bf16.msra.mxu0 0
        %1884 = vmatprep.mubr.bf16.mxu0 0
        %1885 = vmatmul.mubr.bf16.gmra.mrb[0].mxu0 %v1850
        %v1886 = vpop.f32.mrb[0].mxu0
        %v1887 = vadd.f32 0.0, %v1886
        %v1888 = vpop.f32.mrb[0].mxu0
        %v1889 = vpop.f32.mrb[0].mxu0
        %v1890 = vpop.f32.mrb[0].mxu0
        %1891 = vdwg.mxu0
        %v1893 = vrot.slane %v1236, 7
        %v1896 = vrot.slane %v1541, 6
        %v1899 = vrot.slane %v1846, 5
        %v1901 = vsel %vm697, %v930, %v1893
        %v1902 = vsel %vm699, %v1901, %v1896
        %v1903 = vsel %vm701, %v1902, %v1899
        %v1905 = vrot.slane %v1277, 7
        %v1908 = vrot.slane %v1582, 6
        %v1911 = vrot.slane %v1887, 5
        %v1913 = vsel %vm697, %v972, %v1905
        %v1914 = vsel %vm699, %v1913, %v1908
        %v1915 = vsel %vm701, %v1914, %v1911
        %v1916 = vpack.c.bf16 %v1915, %v1915
        %v1917 = vld [vmem:[%s8] sm:$0xf]
        %v1918 = vld [vmem:[%s8 + $0x4] sm:$0xf]
        %v1919 = vld [vmem:[%s8 + $0x8] sm:$0xf]
        %v1920 = vld [vmem:[%s8 + $0xc] sm:$0xf]
        %v1921 = vld [vmem:[%s9] sm:$0x1]
        %v1923 = vlaneseq
        %v1924 = vshrl.u32 %v1923, 7
        %v1925 = vsub.s32 0, %v1924
        %v1926 = vrot.slane %v1921, %v1925
        %v1932 = vunpack.c.l.b16 %v1917
        %v1933 = vunpack.c.l.b16 %v1918
        %v1934 = vunpack.c.l.b16 %v1919
        %v1935 = vunpack.c.l.b16 %v1920
        %v1936 = vpack.c.b16 %v1933, %v1932
        %v1937 = vpack.c.b16 %v1935, %v1934
        %v1941 = vsel %vm487, %v1916, 0
        %1943 = vmatprep.subr.bf16.mxu0 0
        %1944 = vmatpush1.bf16.msra.mxu0 %v1936
        %1945 = vmatprep.subr.bf16.mxu0 0
        %1946 = vmatpush1.bf16.msra.mxu0 %v1937
        %1947 = vmatprep.subr.bf16.mxu0 0
        %1948 = vmatpush1.bf16.msra.mxu0 0
        %1949 = vmatprep.subr.bf16.mxu0 0
        %1950 = vmatpush1.bf16.msra.mxu0 0
        %1951 = vmatprep.subr.bf16.mxu0 0
        %1952 = vmatpush1.bf16.msra.mxu0 0
        %1953 = vmatprep.subr.bf16.mxu0 0
        %1954 = vmatpush1.bf16.msra.mxu0 0
        %1955 = vmatprep.subr.bf16.mxu0 0
        %1956 = vmatpush1.bf16.msra.mxu0 0
        %1957 = vmatprep.subr.bf16.mxu0 0
        %1958 = vmatpush1.bf16.msra.mxu0 0
        %1959 = vmatprep.subr.bf16.mxu0 0
        %1960 = vmatpush1.bf16.msra.mxu0 0
        %1961 = vmatprep.subr.bf16.mxu0 0
        %1962 = vmatpush1.bf16.msra.mxu0 0
        %1963 = vmatprep.subr.bf16.mxu0 0
        %1964 = vmatpush1.bf16.msra.mxu0 0
        %1965 = vmatprep.subr.bf16.mxu0 0
        %1966 = vmatpush1.bf16.msra.mxu0 0
        %1967 = vmatprep.subr.bf16.mxu0 0
        %1968 = vmatpush1.bf16.msra.mxu0 0
        %1969 = vmatprep.subr.bf16.mxu0 0
        %1970 = vmatpush1.bf16.msra.mxu0 0
        %1971 = vmatprep.subr.bf16.mxu0 0
        %1972 = vmatpush1.bf16.msra.mxu0 0
        %1973 = vmatprep.subr.bf16.mxu0 0
        %1974 = vmatpush1.bf16.msra.mxu0 0
        %1975 = vmatprep.mubr.bf16.mxu0 0
        %1976 = vmatmul.mubr.bf16.gmra.mrb[0].mxu0 %v1941
        %v1977 = vpop.f32.mrb[0].mxu0
        %v1978 = vadd.f32 %v1926, %v1977
        %v1979 = vpop.f32.mrb[0].mxu0
        %v1980 = vpop.f32.mrb[0].mxu0
        %v1981 = vpop.f32.mrb[0].mxu0
        %1982 = vdwg.mxu0
        %vm1983 = vcmask 125952
        %1984 = vst.msk [vmem:[%s429] sm:$0xf] %vm1983, %v1978
        %1985 = vst.msk [vmem:[%s436] sm:$0xf] %vm1983, %v1903
        %s1986 = sand.u32 %s246, 1
        %s1987 = scalar_lea.sflag [#allocation6], %s1986
        %s1988 = sand.u32 %s246, 1
        %s1989 = smul.addr %s1988, 4
        %s1990 = scalar_lea.vmem [#allocation10], %s1989
        %s1991 = sand.u32 %s272, 1
        %s1992 = scalar_lea.sflag [#allocation12], %s1991
        %s1993 = sand.u32 %s272, 1
        %s1994 = smul.addr %s1993, 4
        %s1995 = scalar_lea.vmem [#allocation11], %s1994
        // Predicated region
        $region69: #{tpu_custom_call.1} parent=55 // pred_check
          %p1996 = pneg %p256
        $region70: #{tpu_custom_call.1} parent=55 // pred_check_branch
          %1998 = sbr.rel (%p1996) target = $region72
        $region71: #{tpu_custom_call.1} parent=55 // pred_region
          %s2000 = ssub.s32 64, 64
          %2001 = vsyncadd %s1987, %s2000
          %s2002 = smul.addr %s39, 64
          %s2003 = scalar_lea.hbm %s10, %s2002
          %s2005 = sshll.u32 %s1990, 4
          %s2006 = int_to_ptr.vmem [resolvable:$true] %s2005
          %2008 = dma.vmem_to_hbm [thread:$0]  %s2006, 64, %s2003, %s1987
        $region72: #{tpu_custom_call.1} parent=55 // pred_fallthru
          _
        // Predicated region
        $region73: #{tpu_custom_call.1} parent=55 // pred_check
          %p2009 = pneg %p282
        $region74: #{tpu_custom_call.1} parent=55 // pred_check_branch
          %2011 = sbr.rel (%p2009) target = $region76
        $region75: #{tpu_custom_call.1} parent=55 // pred_region
          %s2013 = ssub.s32 64, 64
          %2014 = vsyncadd %s1992, %s2013
          %s2015 = smul.addr %s39, 64
          %s2016 = scalar_lea.hbm %s11, %s2015
          %s2018 = sshll.u32 %s1995, 4
          %s2019 = int_to_ptr.vmem [resolvable:$true] %s2018
          %2021 = dma.vmem_to_hbm [thread:$0]  %s2019, 64, %s2016, %s1992
        $region76: #{tpu_custom_call.1} parent=55 // pred_fallthru
          _
      $region56: #{tpu_custom_call.1} parent=5 // pred_fallthru
        _
      %p2022 = scmp.le.s32.totalorder 2, %s34
      // Predicated region
      $region77: #{tpu_custom_call.1} parent=5 // pred_check
        %p2023 = pneg %p2022
      $region78: #{tpu_custom_call.1} parent=5 // pred_check_branch
        %2025 = sbr.rel (%p2023) target = $region80
      $region79: #{tpu_custom_call.1} parent=5 // pred_region
        %s2026 = ssub.s32 %s34, 2
        // Predicated region
        $region81: #{tpu_custom_call.1} parent=79 // pred_check
          %p2027 = pneg %p262
        $region82: #{tpu_custom_call.1} parent=79 // pred_check_branch
          %2029 = sbr.rel (%p2027) target = $region84
        $region83: #{tpu_custom_call.1} parent=79 // pred_region
          %s2030 = sand.u32 %s247, 1
          %s2031 = scalar_lea.sflag [#allocation6], %s2030
          %s2032 = sand.u32 %s247, 1
          %s2033 = smul.addr %s2032, 4
          %s2034 = scalar_lea.vmem [#allocation10], %s2033
          %2035 = dma.done %s2031, 64
        $region84: #{tpu_custom_call.1} parent=79 // pred_fallthru
          _
        // Predicated region
        $region85: #{tpu_custom_call.1} parent=79 // pred_check
          %p2036 = pneg %p288
        $region86: #{tpu_custom_call.1} parent=79 // pred_check_branch
          %2038 = sbr.rel (%p2036) target = $region88
        $region87: #{tpu_custom_call.1} parent=79 // pred_region
          %s2039 = sand.u32 %s273, 1
          %s2040 = scalar_lea.sflag [#allocation12], %s2039
          %s2041 = sand.u32 %s273, 1
          %s2042 = smul.addr %s2041, 4
          %s2043 = scalar_lea.vmem [#allocation11], %s2042
          %2044 = dma.done %s2040, 64
        $region88: #{tpu_custom_call.1} parent=79 // pred_fallthru
          _
      $region80: #{tpu_custom_call.1} parent=5 // pred_fallthru
        _
    $region6: #{tpu_custom_call.1} parent=1 // loop_footer
      %s38 = sadd.s32 1, %s34
    $region7: #{tpu_custom_call.1} parent=1 // loop_footer_branch
      %33 = sbr.rel target = $region3
    $region8: #{tpu_custom_call.1} parent=1 // loop_exit
      _
    %2045 = vsyncpa [#allocation5], 1
    %s2046 = scalar_lea.sflag [#allocation5], 1
    %2047 = vsyncpa %s2046, 1
    %2048 = vsyncpa [#allocation8], 1
    %2049 = vsyncpa [#allocation6], 1
    %s2050 = scalar_lea.sflag [#allocation6], 1
    %2051 = vsyncpa %s2050, 1
    %2052 = vsyncpa [#allocation12], 1
    %s2053 = scalar_lea.sflag [#allocation12], 1
    %2054 = vsyncpa %s2053, 1

</llo_original>
